<compile_context>
chip_gen: v7x
topology: tpu7x:2x2x1
jax: 0.10.0
libtpu: 0.0.40
codegen_flags: <defaults>
</compile_context>

<pallas_src>
import functools

import jax
import jax.numpy as jnp
from jax.experimental import pallas as pl
from jax.experimental.pallas import tpu as pltpu

K = 7          # conv3x3() actually builds kernel_size=7 convs
PAD = 3        # padding=3
EPS = 1e-5     # BatchNorm1d eps


def _make_kernel(stride, TL, TLh, L1, n_tiles, rem):
    """Kernel for one (batch, L-tile) grid cell, NCL layout.

    xp_ref : (1, C_in, Lp)   whole zero-padded input sequence (bf16), resident per n
    w1_ref : (K, P, C_in)    conv1 weight per tap, bn1 scale folded (bf16)
    w2_ref : (K, P, P)       conv2 weight per tap, bn2 scale folded (bf16)
    wd_ref : (P, C_in)       downsample 1x1 weight, bnd scale and 1/stride folded (bf16)
    b1_ref : (P, 1)          bn1 bias (f32)
    b2d_ref: (P, 1)          bn2 bias + bnd bias (f32)
    out_ref: (1, P, TL)      f32
    """
    s = stride
    lpad = PAD * (s + 1)                       # left zero pad applied in the wrapper

    def kernel(xp_ref, w1_ref, w2_ref, wd_ref, b1_ref, b2d_ref, out_ref):
        t = pl.program_id(1)
        if n_tiles == 1:
            off = 0                            # static offsets for the single-tile case
        else:
            off = t * (TL * s)
            if (TL * s) % 128 == 0:
                off = pl.multiple_of(off, 128)

        def x_slice(start, size):
            # documented strided-load pattern: ref[pl.ds(start, size, stride=k)]
            if s == 1:
                return xp_ref[0, :, pl.ds(start, size)]
            return xp_ref[0, :, pl.ds(start, size, stride=s)]

        # ---- conv1 (+bn1 scale folded): K accumulating MXU matmuls --------------
        acc1 = jnp.dot(w1_ref[0], x_slice(off, TLh),
                       preferred_element_type=jnp.float32)          # (P, TLh) f32
        for k in range(1, K):
            acc1 = acc1 + jnp.dot(w1_ref[k], x_slice(off + k, TLh),
                                  preferred_element_type=jnp.float32)

        # bn1 bias + ReLU + edge zeroing + bf16 cast, one pass.
        # Dropout(0.2) is identity in eval mode.
        # Zeroing columns outside [0, L1) implements conv2's zero padding and makes
        # L-tile / sequence edges exact.
        col = jax.lax.broadcasted_iota(jnp.int32, (1, TLh), 1) + (t * TL - PAD)
        valid = (col >= 0) & (col < L1)
        h1 = jnp.where(valid, jnp.maximum(acc1 + b1_ref[...], 0.0),
                       0.0).astype(jnp.bfloat16)                    # (P, TLh) bf16

        # ---- conv2 (+bn2 scale folded): K accumulating matmuls on shifted views --
        acc2 = jnp.dot(w2_ref[0], h1[:, 0:TL],
                       preferred_element_type=jnp.float32)          # (P, TL) f32
        for k in range(1, K):
            acc2 = acc2 + jnp.dot(w2_ref[k], h1[:, k:k + TL],
                                  preferred_element_type=jnp.float32)

        # ---- downsample branch fused into the same accumulator -------------------
        # AvgPool1d(s, ceil_mode=True) -> 1x1 conv -> bn; 1/s and bnd scale are
        # already folded into wd.
        if s == 1:
            acc2 = acc2 + jnp.dot(wd_ref[...], x_slice(off + lpad, TL),
                                  preferred_element_type=jnp.float32)
        elif rem == 0:                                   # all pool windows are full
            for r in range(s):
                acc2 = acc2 + jnp.dot(wd_ref[...], x_slice(off + lpad + r, TL),
                                      preferred_element_type=jnp.float32)
        else:                                            # ragged ceil_mode last window
            pooled = x_slice(off + lpad, TL).astype(jnp.float32)
            for r in range(1, s):
                pooled = pooled + x_slice(off + lpad + r, TL).astype(jnp.float32)
            cp = jax.lax.broadcasted_iota(jnp.int32, (1, TL), 1) + t * TL
            pooled = jnp.where(cp == (L1 - 1), pooled * (s / rem), pooled)
            acc2 = acc2 + jnp.dot(wd_ref[...], pooled.astype(jnp.bfloat16),
                                  preferred_element_type=jnp.float32)

        # ---- combined bias + residual ReLU, lane-dense (P, TL) store -------------
        out_ref[0] = jnp.maximum(acc2 + b2d_ref[...], 0.0)

    return kernel


def _fold_bn(gamma, beta, mean, var):
    scale = (gamma / jnp.sqrt(var + EPS)).astype(jnp.float32)
    bias = (beta - mean * scale).astype(jnp.float32)
    return scale, bias


def basic_block_forward(x_ncl, params, stride=1, tl_max=512):
    """Eval-mode BasicBlock forward.  x_ncl: (N, C_in, L) f32 -> (N, planes, L1) f32."""
    N, C_in, L = x_ncl.shape
    w1 = params["w1"]                          # (planes, C_in, K) torch layout
    planes = w1.shape[0]
    s = stride
    # This kernel implements the downsample branch; BasicBlock only builds it when:
    assert s > 1 or C_in != planes * 4, "BasicBlock without downsample not supported"

    L1 = (L - 1) // s + 1                      # conv1 / ceil-mode avgpool output length
    rem = L - (L1 - 1) * s                     # size of the last (possibly ragged) pool window
    rem = 0 if rem == s else rem

    # L tiling: whole sequence when it fits, else 512-wide lane tiles
    # (256 for large channel counts to stay inside v7x's 64 MiB VMEM).
    if planes >= 256:
        tl_max = min(tl_max, 256)
    TL = L1 if L1 <= tl_max else tl_max
    nLt = pl.cdiv(L1, TL)
    TLh = TL + 2 * PAD                         # conv1 output cols incl. conv2 halo

    # Zero-padded bf16 input.  The whole padded sequence is resident per sample: its
    # block index is constant along the L-tile axis, so it is DMA'd once per n.
    # TODO(synk): for very long sequences (C_in * Lp beyond a few MiB) switch to
    # halo-window manual DMA (memory_space=pl.ANY + make_async_copy) instead.
    lpad = PAD * (s + 1)
    Lp = nLt * TL * s + 5 * s + K              # covers the last tile's conv1 halo window
    Lp = ((Lp + 127) // 128) * 128
    xp = jnp.pad(x_ncl.astype(jnp.bfloat16),
                 ((0, 0), (0, 0), (lpad, Lp - L - lpad)))

    # Fold BN scales (in f32) into the conv weights; keep only the bias adds.
    s1, b1 = _fold_bn(*params["bn1"])
    s2, b2 = _fold_bn(*params["bn2"])
    sd, bd = _fold_bn(*params["bnd"])
    w1s = jnp.transpose(params["w1"] * s1[:, None, None], (2, 0, 1))   # (K, P, C_in)
    w2s = jnp.transpose(params["w2"] * s2[:, None, None], (2, 0, 1))   # (K, P, P)
    wds = params["wd"][:, :, 0] * sd[:, None] / s                      # (P, C_in), 1/s folded
    w1s = w1s.astype(jnp.bfloat16)
    w2s = w2s.astype(jnp.bfloat16)
    wds = wds.astype(jnp.bfloat16)
    b1 = b1.reshape(planes, 1)
    b2d = (b2 + bd).reshape(planes, 1)

    kernel = _make_kernel(s, TL, TLh, L1, nLt, rem)
    vec_spec = pl.BlockSpec((planes, 1), lambda n, t: (0, 0))
    # TODO(synk): constant-index weight/bias operands are still double-buffered; switch
    # them to single-buffering (pipeline_mode=pl.Buffered(1)) to save VMEM on v7x.
    out = pl.pallas_call(
        kernel,
        out_shape=jax.ShapeDtypeStruct((N, planes, L1), jnp.float32),
        grid_spec=pltpu.PrefetchScalarGridSpec(
            num_scalar_prefetch=0,
            grid=(N, nLt),
            in_specs=[
                pl.BlockSpec((1, C_in, Lp), lambda n, t: (n, 0, 0)),
                pl.BlockSpec((K, planes, C_in), lambda n, t: (0, 0, 0)),
                pl.BlockSpec((K, planes, planes), lambda n, t: (0, 0, 0)),
                pl.BlockSpec((planes, C_in), lambda n, t: (0, 0)),
                vec_spec, vec_spec,
            ],
            out_specs=pl.BlockSpec((1, planes, TL), lambda n, t: (n, 0, t)),
        ),
        compiler_params=pltpu.CompilerParams(
            dimension_semantics=("parallel", "parallel"),
            vmem_limit_bytes=36 * 1024 * 1024),
    )(xp, w1s, w2s, wds, b1, b2d)
    return out


# ---------------------------- pure-JAX reference -----------------------------
def basic_block_reference(x_ncl, params, stride=1):
    dn = ("NCH", "OIH", "NCH")

    def bn(y, gamma, beta, mean, var):
        return ((y - mean[None, :, None]) / jnp.sqrt(var[None, :, None] + EPS)
                * gamma[None, :, None] + beta[None, :, None])

    out = jax.lax.conv_general_dilated(x_ncl, params["w1"], (stride,),
                                       [(PAD, PAD)], dimension_numbers=dn)
    out = jnp.maximum(bn(out, *params["bn1"]), 0.0)
    out = jax.lax.conv_general_dilated(out, params["w2"], (1,),
                                       [(PAD, PAD)], dimension_numbers=dn)
    out = bn(out, *params["bn2"])

    ident = x_ncl
    if stride > 1:
        N, C, L = x_ncl.shape
        ident = x_ncl.reshape(N, C, L // stride, stride).mean(axis=-1)
    ident = jax.lax.conv_general_dilated(ident, params["wd"], (1,),
                                         [(0, 0)], dimension_numbers=dn)
    ident = bn(ident, *params["bnd"])
    return jnp.maximum(out + ident, 0.0)


# --------------------------------- main --------------------------------------
if __name__ == "__main__":
    key = jax.random.PRNGKey(0)
    N, C_in, L = 2, 4, 16          # inplanes=4, seq length=16
    planes, stride = 8, 1

    ks = jax.random.split(key, 16)
    x = jax.random.normal(ks[0], (N, C_in, L), dtype=jnp.float32)

    def bn_params(k, c):
        k1, k2, k3, k4 = jax.random.split(k, 4)
        gamma = 0.5 + jax.random.uniform(k1, (c,), dtype=jnp.float32)
        beta = 0.1 * jax.random.normal(k2, (c,), dtype=jnp.float32)
        mean = 0.1 * jax.random.normal(k3, (c,), dtype=jnp.float32)
        var = 0.5 + jax.random.uniform(k4, (c,), dtype=jnp.float32)
        return (gamma, beta, mean, var)

    params = {
        "w1": 0.1 * jax.random.normal(ks[1], (planes, C_in, K), jnp.float32),
        "w2": 0.1 * jax.random.normal(ks[2], (planes, planes, K), jnp.float32),
        "wd": 0.1 * jax.random.normal(ks[3], (planes, C_in, 1), jnp.float32),
        "bn1": bn_params(ks[4], planes),
        "bn2": bn_params(ks[5], planes),
        "bnd": bn_params(ks[6], planes),
    }

    fwd = jax.jit(functools.partial(basic_block_forward, stride=stride))
    out = jax.block_until_ready(fwd(x, params))

    ref = basic_block_reference(x, params, stride=stride)
    assert out.shape == ref.shape, (out.shape, ref.shape)
    # bf16 matmul operands with f32 accumulation -> bf16-level tolerance.
    assert jnp.allclose(out, ref, atol=3e-2, rtol=3e-2), \
        float(jnp.max(jnp.abs(out - ref)))
    print("KERNEL_OK")
</pallas_src>

<mosaic_0001>
module attributes {stable_mosaic.version = 11 : i64} {
  func.func @kernel(%arg0: i32, %arg1: i32, %arg2: memref<1x4x128xbf16, #tpu.memory_space<vmem>>, %arg3: memref<7x8x4xbf16, #tpu.memory_space<vmem>>, %arg4: memref<7x8x8xbf16, #tpu.memory_space<vmem>>, %arg5: memref<8x4xbf16, #tpu.memory_space<vmem>>, %arg6: memref<8x1xf32, #tpu.memory_space<vmem>>, %arg7: memref<8x1xf32, #tpu.memory_space<vmem>>, %arg8: memref<1x8x16xf32, #tpu.memory_space<vmem>>) attributes {dimension_semantics = [#tpu.dimension_semantics<parallel>, #tpu.dimension_semantics<parallel>], iteration_bounds = array<i64: 2, 1>, scalar_prefetch = 0 : i64, scratch_operands = 0 : i64, tpu.core_type = #tpu.core_type<tc>, window_params = [{transform_indices = @transform_0, window_bounds = array<i64: 1, 4, 128>}, {pipeline_mode = #tpu.pipeline_mode<synchronous>, transform_indices = @transform_1, window_bounds = array<i64: 7, 8, 4>}, {pipeline_mode = #tpu.pipeline_mode<synchronous>, transform_indices = @transform_2, window_bounds = array<i64: 7, 8, 8>}, {pipeline_mode = #tpu.pipeline_mode<synchronous>, transform_indices = @transform_3, window_bounds = array<i64: 8, 4>}, {pipeline_mode = #tpu.pipeline_mode<synchronous>, transform_indices = @transform_4, window_bounds = array<i64: 8, 1>}, {pipeline_mode = #tpu.pipeline_mode<synchronous>, transform_indices = @transform_5, window_bounds = array<i64: 8, 1>}, {transform_indices = @transform_6, window_bounds = array<i64: 1, 8, 16>}]} {
    %c0 = arith.constant 0 : index
    %c0_0 = arith.constant 0 : index
    %c0_1 = arith.constant 0 : index
    %0 = vector.load %arg3[%c0, %c0_0, %c0_1] : memref<7x8x4xbf16, #tpu.memory_space<vmem>>, vector<1x8x4xbf16>
    %1 = vector.shape_cast %0 : vector<1x8x4xbf16> to vector<8x4xbf16>
    %c0_2 = arith.constant 0 : index
    %c0_3 = arith.constant 0 : index
    %c0_4 = arith.constant 0 : index
    %2 = vector.load %arg2[%c0_2, %c0_3, %c0_4] : memref<1x4x128xbf16, #tpu.memory_space<vmem>>, vector<1x4x22xbf16>
    %3 = vector.shape_cast %2 : vector<1x4x22xbf16> to vector<4x22xbf16>
    %cst = arith.constant dense<0.000000e+00> : vector<8x22xf32>
    %4 = tpu.matmul %1, %3, %cst {dimension_numbers = #tpu.dot_dimension_numbers<[1], [0], [0], [1], [0, 0, 1, 1], [], []>} : vector<8x4xbf16>, vector<4x22xbf16>, vector<8x22xf32> -> vector<8x22xf32>
    %c1 = arith.constant 1 : index
    %c0_5 = arith.constant 0 : index
    %c0_6 = arith.constant 0 : index
    %5 = vector.load %arg3[%c1, %c0_5, %c0_6] : memref<7x8x4xbf16, #tpu.memory_space<vmem>>, vector<1x8x4xbf16>
    %6 = vector.shape_cast %5 : vector<1x8x4xbf16> to vector<8x4xbf16>
    %c0_7 = arith.constant 0 : index
    %c0_8 = arith.constant 0 : index
    %c1_9 = arith.constant 1 : index
    %7 = vector.load %arg2[%c0_7, %c0_8, %c1_9] : memref<1x4x128xbf16, #tpu.memory_space<vmem>>, vector<1x4x22xbf16>
    %8 = vector.shape_cast %7 : vector<1x4x22xbf16> to vector<4x22xbf16>
    %cst_10 = arith.constant dense<0.000000e+00> : vector<8x22xf32>
    %9 = tpu.matmul %6, %8, %cst_10 {dimension_numbers = #tpu.dot_dimension_numbers<[1], [0], [0], [1], [0, 0, 1, 1], [], []>} : vector<8x4xbf16>, vector<4x22xbf16>, vector<8x22xf32> -> vector<8x22xf32>
    %10 = arith.addf %4, %9 : vector<8x22xf32>
    %c2 = arith.constant 2 : index
    %c0_11 = arith.constant 0 : index
    %c0_12 = arith.constant 0 : index
    %11 = vector.load %arg3[%c2, %c0_11, %c0_12] : memref<7x8x4xbf16, #tpu.memory_space<vmem>>, vector<1x8x4xbf16>
    %12 = vector.shape_cast %11 : vector<1x8x4xbf16> to vector<8x4xbf16>
    %c0_13 = arith.constant 0 : index
    %c0_14 = arith.constant 0 : index
    %c2_15 = arith.constant 2 : index
    %13 = vector.load %arg2[%c0_13, %c0_14, %c2_15] : memref<1x4x128xbf16, #tpu.memory_space<vmem>>, vector<1x4x22xbf16>
    %14 = vector.shape_cast %13 : vector<1x4x22xbf16> to vector<4x22xbf16>
    %cst_16 = arith.constant dense<0.000000e+00> : vector<8x22xf32>
    %15 = tpu.matmul %12, %14, %cst_16 {dimension_numbers = #tpu.dot_dimension_numbers<[1], [0], [0], [1], [0, 0, 1, 1], [], []>} : vector<8x4xbf16>, vector<4x22xbf16>, vector<8x22xf32> -> vector<8x22xf32>
    %16 = arith.addf %10, %15 : vector<8x22xf32>
    %c3 = arith.constant 3 : index
    %c0_17 = arith.constant 0 : index
    %c0_18 = arith.constant 0 : index
    %17 = vector.load %arg3[%c3, %c0_17, %c0_18] : memref<7x8x4xbf16, #tpu.memory_space<vmem>>, vector<1x8x4xbf16>
    %18 = vector.shape_cast %17 : vector<1x8x4xbf16> to vector<8x4xbf16>
    %c0_19 = arith.constant 0 : index
    %c0_20 = arith.constant 0 : index
    %c3_21 = arith.constant 3 : index
    %19 = vector.load %arg2[%c0_19, %c0_20, %c3_21] : memref<1x4x128xbf16, #tpu.memory_space<vmem>>, vector<1x4x22xbf16>
    %20 = vector.shape_cast %19 : vector<1x4x22xbf16> to vector<4x22xbf16>
    %cst_22 = arith.constant dense<0.000000e+00> : vector<8x22xf32>
    %21 = tpu.matmul %18, %20, %cst_22 {dimension_numbers = #tpu.dot_dimension_numbers<[1], [0], [0], [1], [0, 0, 1, 1], [], []>} : vector<8x4xbf16>, vector<4x22xbf16>, vector<8x22xf32> -> vector<8x22xf32>
    %22 = arith.addf %16, %21 : vector<8x22xf32>
    %c4 = arith.constant 4 : index
    %c0_23 = arith.constant 0 : index
    %c0_24 = arith.constant 0 : index
    %23 = vector.load %arg3[%c4, %c0_23, %c0_24] : memref<7x8x4xbf16, #tpu.memory_space<vmem>>, vector<1x8x4xbf16>
    %24 = vector.shape_cast %23 : vector<1x8x4xbf16> to vector<8x4xbf16>
    %c0_25 = arith.constant 0 : index
    %c0_26 = arith.constant 0 : index
    %c4_27 = arith.constant 4 : index
    %25 = vector.load %arg2[%c0_25, %c0_26, %c4_27] : memref<1x4x128xbf16, #tpu.memory_space<vmem>>, vector<1x4x22xbf16>
    %26 = vector.shape_cast %25 : vector<1x4x22xbf16> to vector<4x22xbf16>
    %cst_28 = arith.constant dense<0.000000e+00> : vector<8x22xf32>
    %27 = tpu.matmul %24, %26, %cst_28 {dimension_numbers = #tpu.dot_dimension_numbers<[1], [0], [0], [1], [0, 0, 1, 1], [], []>} : vector<8x4xbf16>, vector<4x22xbf16>, vector<8x22xf32> -> vector<8x22xf32>
    %28 = arith.addf %22, %27 : vector<8x22xf32>
    %c5 = arith.constant 5 : index
    %c0_29 = arith.constant 0 : index
    %c0_30 = arith.constant 0 : index
    %29 = vector.load %arg3[%c5, %c0_29, %c0_30] : memref<7x8x4xbf16, #tpu.memory_space<vmem>>, vector<1x8x4xbf16>
    %30 = vector.shape_cast %29 : vector<1x8x4xbf16> to vector<8x4xbf16>
    %c0_31 = arith.constant 0 : index
    %c0_32 = arith.constant 0 : index
    %c5_33 = arith.constant 5 : index
    %31 = vector.load %arg2[%c0_31, %c0_32, %c5_33] : memref<1x4x128xbf16, #tpu.memory_space<vmem>>, vector<1x4x22xbf16>
    %32 = vector.shape_cast %31 : vector<1x4x22xbf16> to vector<4x22xbf16>
    %cst_34 = arith.constant dense<0.000000e+00> : vector<8x22xf32>
    %33 = tpu.matmul %30, %32, %cst_34 {dimension_numbers = #tpu.dot_dimension_numbers<[1], [0], [0], [1], [0, 0, 1, 1], [], []>} : vector<8x4xbf16>, vector<4x22xbf16>, vector<8x22xf32> -> vector<8x22xf32>
    %34 = arith.addf %28, %33 : vector<8x22xf32>
    %c6 = arith.constant 6 : index
    %c0_35 = arith.constant 0 : index
    %c0_36 = arith.constant 0 : index
    %35 = vector.load %arg3[%c6, %c0_35, %c0_36] : memref<7x8x4xbf16, #tpu.memory_space<vmem>>, vector<1x8x4xbf16>
    %36 = vector.shape_cast %35 : vector<1x8x4xbf16> to vector<8x4xbf16>
    %c0_37 = arith.constant 0 : index
    %c0_38 = arith.constant 0 : index
    %c6_39 = arith.constant 6 : index
    %37 = vector.load %arg2[%c0_37, %c0_38, %c6_39] : memref<1x4x128xbf16, #tpu.memory_space<vmem>>, vector<1x4x22xbf16>
    %38 = vector.shape_cast %37 : vector<1x4x22xbf16> to vector<4x22xbf16>
    %cst_40 = arith.constant dense<0.000000e+00> : vector<8x22xf32>
    %39 = tpu.matmul %36, %38, %cst_40 {dimension_numbers = #tpu.dot_dimension_numbers<[1], [0], [0], [1], [0, 0, 1, 1], [], []>} : vector<8x4xbf16>, vector<4x22xbf16>, vector<8x22xf32> -> vector<8x22xf32>
    %40 = arith.addf %34, %39 : vector<8x22xf32>
    %41 = tpu.iota {dimensions = array<i32: 1>} : vector<1x22xi32>
    %c16_i32 = arith.constant 16 : i32
    %42 = arith.muli %arg1, %c16_i32 : i32
    %c3_i32 = arith.constant 3 : i32
    %43 = arith.subi %42, %c3_i32 : i32
    %44 = vector.broadcast %43 : i32 to vector<1x22xi32>
    %45 = arith.addi %41, %44 : vector<1x22xi32>
    %c0_i32 = arith.constant 0 : i32
    %46 = vector.broadcast %c0_i32 : i32 to vector<1x22xi32>
    %47 = arith.cmpi sge, %45, %46 : vector<1x22xi32>
    %c16_i32_41 = arith.constant 16 : i32
    %48 = vector.broadcast %c16_i32_41 : i32 to vector<1x22xi32>
    %49 = arith.cmpi slt, %45, %48 : vector<1x22xi32>
    %50 = arith.andi %47, %49 : vector<1x22xi1>
    %c0_42 = arith.constant 0 : index
    %c0_43 = arith.constant 0 : index
    %51 = vector.load %arg6[%c0_42, %c0_43] : memref<8x1xf32, #tpu.memory_space<vmem>>, vector<8x1xf32>
    %52 = vector.broadcast %51 : vector<8x1xf32> to vector<8x22xf32>
    %53 = arith.addf %40, %52 : vector<8x22xf32>
    %cst_44 = arith.constant 0.000000e+00 : f32
    %54 = vector.broadcast %cst_44 : f32 to vector<8x22xf32>
    %55 = arith.maximumf %53, %54 : vector<8x22xf32>
    %cst_45 = arith.constant 0.000000e+00 : f32
    %56 = vector.shape_cast %50 : vector<1x22xi1> to vector<1x22xi1>
    %57 = vector.broadcast %56 : vector<1x22xi1> to vector<8x22xi1>
    %58 = vector.broadcast %cst_45 : f32 to vector<8x22xf32>
    %59 = arith.select %57, %55, %58 : vector<8x22xi1>, vector<8x22xf32>
    %60 = arith.truncf %59 : vector<8x22xf32> to vector<8x22xbf16>
    %c0_46 = arith.constant 0 : index
    %c0_47 = arith.constant 0 : index
    %c0_48 = arith.constant 0 : index
    %61 = vector.load %arg4[%c0_46, %c0_47, %c0_48] : memref<7x8x8xbf16, #tpu.memory_space<vmem>>, vector<1x8x8xbf16>
    %62 = vector.shape_cast %61 : vector<1x8x8xbf16> to vector<8x8xbf16>
    %63 = vector.extract_strided_slice %60 {offsets = [0, 0], sizes = [8, 16], strides = [1, 1]} : vector<8x22xbf16> to vector<8x16xbf16>
    %cst_49 = arith.constant dense<0.000000e+00> : vector<8x16xf32>
    %64 = tpu.matmul %62, %63, %cst_49 {dimension_numbers = #tpu.dot_dimension_numbers<[1], [0], [0], [1], [0, 0, 1, 1], [], []>} : vector<8x8xbf16>, vector<8x16xbf16>, vector<8x16xf32> -> vector<8x16xf32>
    %c1_50 = arith.constant 1 : index
    %c0_51 = arith.constant 0 : index
    %c0_52 = arith.constant 0 : index
    %65 = vector.load %arg4[%c1_50, %c0_51, %c0_52] : memref<7x8x8xbf16, #tpu.memory_space<vmem>>, vector<1x8x8xbf16>
    %66 = vector.shape_cast %65 : vector<1x8x8xbf16> to vector<8x8xbf16>
    %67 = vector.extract_strided_slice %60 {offsets = [0, 1], sizes = [8, 16], strides = [1, 1]} : vector<8x22xbf16> to vector<8x16xbf16>
    %cst_53 = arith.constant dense<0.000000e+00> : vector<8x16xf32>
    %68 = tpu.matmul %66, %67, %cst_53 {dimension_numbers = #tpu.dot_dimension_numbers<[1], [0], [0], [1], [0, 0, 1, 1], [], []>} : vector<8x8xbf16>, vector<8x16xbf16>, vector<8x16xf32> -> vector<8x16xf32>
    %69 = arith.addf %64, %68 : vector<8x16xf32>
    %c2_54 = arith.constant 2 : index
    %c0_55 = arith.constant 0 : index
    %c0_56 = arith.constant 0 : index
    %70 = vector.load %arg4[%c2_54, %c0_55, %c0_56] : memref<7x8x8xbf16, #tpu.memory_space<vmem>>, vector<1x8x8xbf16>
    %71 = vector.shape_cast %70 : vector<1x8x8xbf16> to vector<8x8xbf16>
    %72 = vector.extract_strided_slice %60 {offsets = [0, 2], sizes = [8, 16], strides = [1, 1]} : vector<8x22xbf16> to vector<8x16xbf16>
    %cst_57 = arith.constant dense<0.000000e+00> : vector<8x16xf32>
    %73 = tpu.matmul %71, %72, %cst_57 {dimension_numbers = #tpu.dot_dimension_numbers<[1], [0], [0], [1], [0, 0, 1, 1], [], []>} : vector<8x8xbf16>, vector<8x16xbf16>, vector<8x16xf32> -> vector<8x16xf32>
    %74 = arith.addf %69, %73 : vector<8x16xf32>
    %c3_58 = arith.constant 3 : index
    %c0_59 = arith.constant 0 : index
    %c0_60 = arith.constant 0 : index
    %75 = vector.load %arg4[%c3_58, %c0_59, %c0_60] : memref<7x8x8xbf16, #tpu.memory_space<vmem>>, vector<1x8x8xbf16>
    %76 = vector.shape_cast %75 : vector<1x8x8xbf16> to vector<8x8xbf16>
    %77 = vector.extract_strided_slice %60 {offsets = [0, 3], sizes = [8, 16], strides = [1, 1]} : vector<8x22xbf16> to vector<8x16xbf16>
    %cst_61 = arith.constant dense<0.000000e+00> : vector<8x16xf32>
    %78 = tpu.matmul %76, %77, %cst_61 {dimension_numbers = #tpu.dot_dimension_numbers<[1], [0], [0], [1], [0, 0, 1, 1], [], []>} : vector<8x8xbf16>, vector<8x16xbf16>, vector<8x16xf32> -> vector<8x16xf32>
    %79 = arith.addf %74, %78 : vector<8x16xf32>
    %c4_62 = arith.constant 4 : index
    %c0_63 = arith.constant 0 : index
    %c0_64 = arith.constant 0 : index
    %80 = vector.load %arg4[%c4_62, %c0_63, %c0_64] : memref<7x8x8xbf16, #tpu.memory_space<vmem>>, vector<1x8x8xbf16>
    %81 = vector.shape_cast %80 : vector<1x8x8xbf16> to vector<8x8xbf16>
    %82 = vector.extract_strided_slice %60 {offsets = [0, 4], sizes = [8, 16], strides = [1, 1]} : vector<8x22xbf16> to vector<8x16xbf16>
    %cst_65 = arith.constant dense<0.000000e+00> : vector<8x16xf32>
    %83 = tpu.matmul %81, %82, %cst_65 {dimension_numbers = #tpu.dot_dimension_numbers<[1], [0], [0], [1], [0, 0, 1, 1], [], []>} : vector<8x8xbf16>, vector<8x16xbf16>, vector<8x16xf32> -> vector<8x16xf32>
    %84 = arith.addf %79, %83 : vector<8x16xf32>
    %c5_66 = arith.constant 5 : index
    %c0_67 = arith.constant 0 : index
    %c0_68 = arith.constant 0 : index
    %85 = vector.load %arg4[%c5_66, %c0_67, %c0_68] : memref<7x8x8xbf16, #tpu.memory_space<vmem>>, vector<1x8x8xbf16>
    %86 = vector.shape_cast %85 : vector<1x8x8xbf16> to vector<8x8xbf16>
    %87 = vector.extract_strided_slice %60 {offsets = [0, 5], sizes = [8, 16], strides = [1, 1]} : vector<8x22xbf16> to vector<8x16xbf16>
    %cst_69 = arith.constant dense<0.000000e+00> : vector<8x16xf32>
    %88 = tpu.matmul %86, %87, %cst_69 {dimension_numbers = #tpu.dot_dimension_numbers<[1], [0], [0], [1], [0, 0, 1, 1], [], []>} : vector<8x8xbf16>, vector<8x16xbf16>, vector<8x16xf32> -> vector<8x16xf32>
    %89 = arith.addf %84, %88 : vector<8x16xf32>
    %c6_70 = arith.constant 6 : index
    %c0_71 = arith.constant 0 : index
    %c0_72 = arith.constant 0 : index
    %90 = vector.load %arg4[%c6_70, %c0_71, %c0_72] : memref<7x8x8xbf16, #tpu.memory_space<vmem>>, vector<1x8x8xbf16>
    %91 = vector.shape_cast %90 : vector<1x8x8xbf16> to vector<8x8xbf16>
    %92 = vector.extract_strided_slice %60 {offsets = [0, 6], sizes = [8, 16], strides = [1, 1]} : vector<8x22xbf16> to vector<8x16xbf16>
    %cst_73 = arith.constant dense<0.000000e+00> : vector<8x16xf32>
    %93 = tpu.matmul %91, %92, %cst_73 {dimension_numbers = #tpu.dot_dimension_numbers<[1], [0], [0], [1], [0, 0, 1, 1], [], []>} : vector<8x8xbf16>, vector<8x16xbf16>, vector<8x16xf32> -> vector<8x16xf32>
    %94 = arith.addf %89, %93 : vector<8x16xf32>
    %c0_74 = arith.constant 0 : index
    %c0_75 = arith.constant 0 : index
    %95 = vector.load %arg5[%c0_74, %c0_75] : memref<8x4xbf16, #tpu.memory_space<vmem>>, vector<8x4xbf16>
    %c0_76 = arith.constant 0 : index
    %c0_77 = arith.constant 0 : index
    %c6_78 = arith.constant 6 : index
    %96 = vector.load %arg2[%c0_76, %c0_77, %c6_78] : memref<1x4x128xbf16, #tpu.memory_space<vmem>>, vector<1x4x16xbf16>
    %97 = vector.shape_cast %96 : vector<1x4x16xbf16> to vector<4x16xbf16>
    %cst_79 = arith.constant dense<0.000000e+00> : vector<8x16xf32>
    %98 = tpu.matmul %95, %97, %cst_79 {dimension_numbers = #tpu.dot_dimension_numbers<[1], [0], [0], [1], [0, 0, 1, 1], [], []>} : vector<8x4xbf16>, vector<4x16xbf16>, vector<8x16xf32> -> vector<8x16xf32>
    %99 = arith.addf %94, %98 : vector<8x16xf32>
    %c0_80 = arith.constant 0 : index
    %c0_81 = arith.constant 0 : index
    %100 = vector.load %arg7[%c0_80, %c0_81] : memref<8x1xf32, #tpu.memory_space<vmem>>, vector<8x1xf32>
    %101 = vector.broadcast %100 : vector<8x1xf32> to vector<8x16xf32>
    %102 = arith.addf %99, %101 : vector<8x16xf32>
    %cst_82 = arith.constant 0.000000e+00 : f32
    %103 = vector.broadcast %cst_82 : f32 to vector<8x16xf32>
    %104 = arith.maximumf %102, %103 : vector<8x16xf32>
    %c0_83 = arith.constant 0 : index
    %c0_84 = arith.constant 0 : index
    %c0_85 = arith.constant 0 : index
    %105 = vector.load %arg8[%c0_83, %c0_84, %c0_85] : memref<1x8x16xf32, #tpu.memory_space<vmem>>, vector<1x8x16xf32>
    %106 = vector.shape_cast %105 : vector<1x8x16xf32> to vector<8x16xf32>
    %107 = vector.shape_cast %104 : vector<8x16xf32> to vector<1x8x16xf32>
    tpu.vector_store %arg8[%c0_83, %c0_84, %c0_85], %107 {strides = array<i32>} : memref<1x8x16xf32, #tpu.memory_space<vmem>>, vector<1x8x16xf32>,
    return
  }
  func.func @transform_0(%arg0: i32, %arg1: i32) -> (i32, i32, i32) {
    %c0_i32 = arith.constant 0 : i32
    %c0_i32_0 = arith.constant 0 : i32
    %c0_i32_1 = arith.constant 0 : i32
    return %arg0, %c0_i32, %c0_i32_0 : i32, i32, i32
  }
  func.func @transform_1(%arg0: i32, %arg1: i32) -> (i32, i32, i32) {
    %c0_i32 = arith.constant 0 : i32
    %c0_i32_0 = arith.constant 0 : i32
    %c0_i32_1 = arith.constant 0 : i32
    %c0_i32_2 = arith.constant 0 : i32
    return %c0_i32, %c0_i32_0, %c0_i32_1 : i32, i32, i32
  }
  func.func @transform_2(%arg0: i32, %arg1: i32) -> (i32, i32, i32) {
    %c0_i32 = arith.constant 0 : i32
    %c0_i32_0 = arith.constant 0 : i32
    %c0_i32_1 = arith.constant 0 : i32
    %c0_i32_2 = arith.constant 0 : i32
    return %c0_i32, %c0_i32_0, %c0_i32_1 : i32, i32, i32
  }
  func.func @transform_3(%arg0: i32, %arg1: i32) -> (i32, i32) {
    %c0_i32 = arith.constant 0 : i32
    %c0_i32_0 = arith.constant 0 : i32
    %c0_i32_1 = arith.constant 0 : i32
    return %c0_i32, %c0_i32_0 : i32, i32
  }
  func.func @transform_4(%arg0: i32, %arg1: i32) -> (i32, i32) {
    %c0_i32 = arith.constant 0 : i32
    %c0_i32_0 = arith.constant 0 : i32
    %c0_i32_1 = arith.constant 0 : i32
    return %c0_i32, %c0_i32_0 : i32, i32
  }
  func.func @transform_5(%arg0: i32, %arg1: i32) -> (i32, i32) {
    %c0_i32 = arith.constant 0 : i32
    %c0_i32_0 = arith.constant 0 : i32
    %c0_i32_1 = arith.constant 0 : i32
    return %c0_i32, %c0_i32_0 : i32, i32
  }
  func.func @transform_6(%arg0: i32, %arg1: i32) -> (i32, i32, i32) {
    %c0_i32 = arith.constant 0 : i32
    %c0_i32_0 = arith.constant 0 : i32
    return %arg0, %c0_i32, %arg1 : i32, i32, i32
  }
}

</mosaic_0001>

<llo_original>
// kernel: basic_block_forward.1
$region0: #{basic_block_forward.1}
  #allocation0 [shape = 'u32[]', space=smem, size = 0x4, offset = 0x4, fixed_abs, tag = 'smem constant byte address 0x4 - core index']
  #allocation1 [shape = 'u32[144,128]{1,0:T(1,128)}', space=vmem, size = 0x12000, scoped, tag = 'internal scratch']
  %s0 = inlined_call_operand.vmem [shape: bf16[2,4,128], index: 0, kind: input, shape index: {}]
  %s1 = inlined_call_operand.vmem [shape: bf16[7,8,4], index: 1, kind: input, shape index: {}]
  %s2 = inlined_call_operand.vmem [shape: bf16[7,8,8], index: 2, kind: input, shape index: {}]
  %s3 = inlined_call_operand.vmem [shape: bf16[8,4], index: 3, kind: input, shape index: {}]
  %s4 = inlined_call_operand.vmem [shape: f32[8,1], index: 4, kind: input, shape index: {}]
  %s5 = inlined_call_operand.vmem [shape: f32[8,1], index: 5, kind: input, shape index: {}]
  %s6 = inlined_call_operand.hbm [shape: f32[2,8,16], index: 6, kind: output, shape index: {}]
  %s7 = sld [smem:[#allocation0]]
  $region57: #{basic_block_forward.1} parent=0
    _
  %s9 = ssub.s32 1, %s7
  %s10 = scalar_select 0, %s9, %s7
  $region1: #{basic_block_forward.1} parent=0
    #allocation2 [shape = 'u8[8192]{0}', space=vmem, size = 0x2000, scoped, tag = 'output window, operand 0']
    #allocation3 [shape = 's32[2]{0}', space=sflag, size = 0x8, scoped, tag = 'scoped memory for basic_block_forward.1']
    %11 = vsyncpa [#allocation3], 0
    %s12 = scalar_lea.sflag [#allocation3], 1
    %13 = vsyncpa %s12, 0
    loop: start=0, step=1, limit=4
    $region2: #{basic_block_forward.1} parent=1 // loop_pre_header
      _
    $region3: #{basic_block_forward.1} parent=1 // loop_header
      %s15 = sphi 0, %s19
      %p16 = scmp.ge.s32.totalorder %s15, 4
      %s22 = sphi 0, %s34
      %s23 = sphi 0, %s30
      %s24 = sphi 0, %s22
      %s25 = sphi 0, %s23
      %s26 = sphi 0, %s24
      %s27 = sphi 0, %s25
      %s37 = sphi 0, %s39
      %s40 = sphi 0, %s37
      %s41 = sphi 0, %s40
      %s57 = sphi 0, %s41
      %s61 = sphi 0, %s61
      %s63 = sphi 0, %s61
      %s64 = sphi 0, %s63
      %s78 = sphi 0, %s64
      %s82 = sphi 0, %s82
      %s84 = sphi 0, %s82
      %s85 = sphi 0, %s84
      %s99 = sphi 0, %s85
      %s103 = sphi 0, %s103
      %s105 = sphi 0, %s103
      %s106 = sphi 0, %s105
      %s120 = sphi 0, %s106
      %s124 = sphi 0, %s124
      %s126 = sphi 0, %s124
      %s127 = sphi 0, %s126
      %s141 = sphi 0, %s127
      %s145 = sphi 0, %s145
      %s147 = sphi 0, %s145
      %s148 = sphi 0, %s147
      %s162 = sphi 0, %s148
      %s170 = sphi 0, %s172
      %s173 = sphi 0, %s170
      %s174 = sphi 0, %s173
      %s190 = sphi 0, %s174
    $region4: #{basic_block_forward.1} parent=1 // loop_header_branch
      %18 = sbr.rel (%p16) target = $region8
    $region5: #{basic_block_forward.1} parent=1 // loop_body
      %s20 = ssub.s32 %s15, 1
      %s21 = ssub.s32 %s15, 2
      %s28 = sadd.s32 1, %s23
      %p29 = scmp.ge.s32.totalorder %s28, 1
      %s30 = scalar_select %p29, 0, %s28
      %s31 = sadd.s32 1, %s22
      %s32 = scalar_select %p29, %s31, %s22
      %p33 = scmp.ge.s32.totalorder %s32, 2
      %s34 = scalar_select %p33, 0, %s32
      %s35 = ssub.s32 %s22, %s34
      %p36 = scmp.eq.s32.totalorder %s35, 0
      %s38 = sadd.s32 %s37, 1
      %s39 = scalar_select %p36, %s37, %s38
      %p42 = pneg %p36
      %p43 = scmp.eq.s32.totalorder %s15, 1
      %p44 = por %p42, %p43
      %p45 = scmp.ne.s32.totalorder %s37, %s40
      %p46 = scmp.eq.s32.totalorder %s15, 0
      %p47 = por %p45, %p46
      %p48 = scmp.ne.s32.totalorder %s37, %s40
      %p49 = scmp.eq.s32.totalorder %s20, 1
      %p50 = por %p48, %p49
      %p51 = scmp.ne.s32.totalorder %s40, %s41
      %p52 = scmp.eq.s32.totalorder %s20, 0
      %p53 = por %p51, %p52
      %p54 = scmp.ne.s32.totalorder %s40, %s41
      %p55 = scmp.eq.s32.totalorder %s21, 1
      %p56 = por %p54, %p55
      %p58 = scmp.ne.s32.totalorder %s41, %s57
      %p59 = scmp.eq.s32.totalorder %s21, 0
      %p60 = por %p58, %p59
      %s62 = sadd.s32 %s61, 1
      %p65 = scmp.eq.s32.totalorder %s15, 1
      %p66 = scmp.ne.s32.totalorder %s61, %s63
      %p67 = scmp.eq.s32.totalorder %s15, 0
      %p68 = por %p66, %p67
      %p69 = scmp.ne.s32.totalorder %s61, %s63
      %p70 = scmp.eq.s32.totalorder %s20, 1
      %p71 = por %p69, %p70
      %p72 = scmp.ne.s32.totalorder %s63, %s64
      %p73 = scmp.eq.s32.totalorder %s20, 0
      %p74 = por %p72, %p73
      %p75 = scmp.ne.s32.totalorder %s63, %s64
      %p76 = scmp.eq.s32.totalorder %s21, 1
      %p77 = por %p75, %p76
      %p79 = scmp.ne.s32.totalorder %s64, %s78
      %p80 = scmp.eq.s32.totalorder %s21, 0
      %p81 = por %p79, %p80
      %s83 = sadd.s32 %s82, 1
      %p86 = scmp.eq.s32.totalorder %s15, 1
      %p87 = scmp.ne.s32.totalorder %s82, %s84
      %p88 = scmp.eq.s32.totalorder %s15, 0
      %p89 = por %p87, %p88
      %p90 = scmp.ne.s32.totalorder %s82, %s84
      %p91 = scmp.eq.s32.totalorder %s20, 1
      %p92 = por %p90, %p91
      %p93 = scmp.ne.s32.totalorder %s84, %s85
      %p94 = scmp.eq.s32.totalorder %s20, 0
      %p95 = por %p93, %p94
      %p96 = scmp.ne.s32.totalorder %s84, %s85
      %p97 = scmp.eq.s32.totalorder %s21, 1
      %p98 = por %p96, %p97
      %p100 = scmp.ne.s32.totalorder %s85, %s99
      %p101 = scmp.eq.s32.totalorder %s21, 0
      %p102 = por %p100, %p101
      %s104 = sadd.s32 %s103, 1
      %p107 = scmp.eq.s32.totalorder %s15, 1
      %p108 = scmp.ne.s32.totalorder %s103, %s105
      %p109 = scmp.eq.s32.totalorder %s15, 0
      %p110 = por %p108, %p109
      %p111 = scmp.ne.s32.totalorder %s103, %s105
      %p112 = scmp.eq.s32.totalorder %s20, 1
      %p113 = por %p111, %p112
      %p114 = scmp.ne.s32.totalorder %s105, %s106
      %p115 = scmp.eq.s32.totalorder %s20, 0
      %p116 = por %p114, %p115
      %p117 = scmp.ne.s32.totalorder %s105, %s106
      %p118 = scmp.eq.s32.totalorder %s21, 1
      %p119 = por %p117, %p118
      %p121 = scmp.ne.s32.totalorder %s106, %s120
      %p122 = scmp.eq.s32.totalorder %s21, 0
      %p123 = por %p121, %p122
      %s125 = sadd.s32 %s124, 1
      %p128 = scmp.eq.s32.totalorder %s15, 1
      %p129 = scmp.ne.s32.totalorder %s124, %s126
      %p130 = scmp.eq.s32.totalorder %s15, 0
      %p131 = por %p129, %p130
      %p132 = scmp.ne.s32.totalorder %s124, %s126
      %p133 = scmp.eq.s32.totalorder %s20, 1
      %p134 = por %p132, %p133
      %p135 = scmp.ne.s32.totalorder %s126, %s127
      %p136 = scmp.eq.s32.totalorder %s20, 0
      %p137 = por %p135, %p136
      %p138 = scmp.ne.s32.totalorder %s126, %s127
      %p139 = scmp.eq.s32.totalorder %s21, 1
      %p140 = por %p138, %p139
      %p142 = scmp.ne.s32.totalorder %s127, %s141
      %p143 = scmp.eq.s32.totalorder %s21, 0
      %p144 = por %p142, %p143
      %s146 = sadd.s32 %s145, 1
      %p149 = scmp.eq.s32.totalorder %s15, 1
      %p150 = scmp.ne.s32.totalorder %s145, %s147
      %p151 = scmp.eq.s32.totalorder %s15, 0
      %p152 = por %p150, %p151
      %p153 = scmp.ne.s32.totalorder %s145, %s147
      %p154 = scmp.eq.s32.totalorder %s20, 1
      %p155 = por %p153, %p154
      %p156 = scmp.ne.s32.totalorder %s147, %s148
      %p157 = scmp.eq.s32.totalorder %s20, 0
      %p158 = por %p156, %p157
      %p159 = scmp.ne.s32.totalorder %s147, %s148
      %p160 = scmp.eq.s32.totalorder %s21, 1
      %p161 = por %p159, %p160
      %p163 = scmp.ne.s32.totalorder %s148, %s162
      %p164 = scmp.eq.s32.totalorder %s21, 0
      %p165 = por %p163, %p164
      %s166 = ssub.s32 %s22, %s34
      %s167 = ssub.s32 %s23, %s30
      %s168 = sor.u32 %s166, %s167
      %p169 = scmp.eq.s32.totalorder %s168, 0
      %s171 = sadd.s32 %s170, 1
      %s172 = scalar_select %p169, %s170, %s171
      %p175 = pneg %p169
      %p176 = scmp.eq.s32.totalorder %s15, 1
      %p177 = por %p175, %p176
      %p178 = scmp.ne.s32.totalorder %s170, %s173
      %p179 = scmp.eq.s32.totalorder %s15, 0
      %p180 = por %p178, %p179
      %p181 = scmp.ne.s32.totalorder %s170, %s173
      %p182 = scmp.eq.s32.totalorder %s20, 1
      %p183 = por %p181, %p182
      %p184 = scmp.ne.s32.totalorder %s173, %s174
      %p185 = scmp.eq.s32.totalorder %s20, 0
      %p186 = por %p184, %p185
      %p187 = scmp.ne.s32.totalorder %s173, %s174
      %p188 = scmp.eq.s32.totalorder %s21, 1
      %p189 = por %p187, %p188
      %p191 = scmp.ne.s32.totalorder %s174, %s190
      %p192 = scmp.eq.s32.totalorder %s21, 0
      %p193 = por %p191, %p192
      %p194 = scmp.le.s32.totalorder 1, %s15
      %p195 = scmp.lt.s32.totalorder %s15, 3
      %p196 = pnand %p194, %p195
      %p197 = pneg %p196
      // Predicated region
      $region9: #{basic_block_forward.1} parent=5 // pred_check
        _
      $region10: #{basic_block_forward.1} parent=5 // pred_check_branch
        %199 = sbr.rel (%p196) target = $region12
      $region11: #{basic_block_forward.1} parent=5 // pred_region
        %s200 = ssub.s32 %s15, 1
        // Predicated region
        $region13: #{basic_block_forward.1} parent=11 // pred_check
          %p201 = pneg %p74
        $region14: #{basic_block_forward.1} parent=11 // pred_check_branch
          %203 = sbr.rel (%p201) target = $region16
        $region15: #{basic_block_forward.1} parent=11 // pred_region
          _
        $region16: #{basic_block_forward.1} parent=11 // pred_fallthru
          _
        // Predicated region
        $region17: #{basic_block_forward.1} parent=11 // pred_check
          %p204 = pneg %p95
        $region18: #{basic_block_forward.1} parent=11 // pred_check_branch
          %206 = sbr.rel (%p204) target = $region20
        $region19: #{basic_block_forward.1} parent=11 // pred_region
          _
        $region20: #{basic_block_forward.1} parent=11 // pred_fallthru
          _
        // Predicated region
        $region21: #{basic_block_forward.1} parent=11 // pred_check
          %p207 = pneg %p116
        $region22: #{basic_block_forward.1} parent=11 // pred_check_branch
          %209 = sbr.rel (%p207) target = $region24
        $region23: #{basic_block_forward.1} parent=11 // pred_region
          _
        $region24: #{basic_block_forward.1} parent=11 // pred_fallthru
          _
        // Predicated region
        $region25: #{basic_block_forward.1} parent=11 // pred_check
          %p210 = pneg %p137
        $region26: #{basic_block_forward.1} parent=11 // pred_check_branch
          %212 = sbr.rel (%p210) target = $region28
        $region27: #{basic_block_forward.1} parent=11 // pred_region
          _
        $region28: #{basic_block_forward.1} parent=11 // pred_fallthru
          _
        // Predicated region
        $region29: #{basic_block_forward.1} parent=11 // pred_check
          %p213 = pneg %p158
        $region30: #{basic_block_forward.1} parent=11 // pred_check_branch
          %215 = sbr.rel (%p213) target = $region32
        $region31: #{basic_block_forward.1} parent=11 // pred_region
          _
        $region32: #{basic_block_forward.1} parent=11 // pred_fallthru
          _
      $region12: #{basic_block_forward.1} parent=5 // pred_fallthru
        _
      %p216 = scmp.lt.s32.totalorder %s15, 2
      // Predicated region
      $region33: #{basic_block_forward.1} parent=5 // pred_check
        %p217 = pneg %p216
      $region34: #{basic_block_forward.1} parent=5 // pred_check_branch
        %219 = sbr.rel (%p217) target = $region36
      $region35: #{basic_block_forward.1} parent=5 // pred_region
        // Predicated region
        $region37: #{basic_block_forward.1} parent=35 // pred_check
          %p220 = pneg %p47
        $region38: #{basic_block_forward.1} parent=35 // pred_check_branch
          %222 = sbr.rel (%p220) target = $region40
        $region39: #{basic_block_forward.1} parent=35 // pred_region
          %p223 = scmp.lt.s32.totalorder %s22, 1
          %s224 = scalar_select %p223, %s22, 1
          %s225 = smul.addr %s224, 2
          %s226 = scalar_lea.vmem %s0, %s225
        $region40: #{basic_block_forward.1} parent=35 // pred_fallthru
          _
      $region36: #{basic_block_forward.1} parent=5 // pred_fallthru
        _
      %p227 = scmp.le.s32.totalorder 1, %s15
      %p228 = scmp.lt.s32.totalorder %s15, 3
      %p229 = pnand %p227, %p228
      %p230 = pneg %p229
      // Predicated region
      $region41: #{basic_block_forward.1} parent=5 // pred_check
        _
      $region42: #{basic_block_forward.1} parent=5 // pred_check_branch
        %232 = sbr.rel (%p229) target = $region44
      $region43: #{basic_block_forward.1} parent=5 // pred_region
        %s233 = ssub.s32 %s15, 1
        %p234 = scmp.lt.s32.totalorder %s24, 1
        %s235 = scalar_select %p234, %s24, 1
        %s236 = smul.addr %s235, 2
        %s237 = scalar_lea.vmem %s0, %s236
        %p238 = pneg %p53
        %p239 = pneg %p50
        %p240 = pneg %p74
        %p241 = pneg %p71
        %p242 = pneg %p95
        %p243 = pneg %p92
        %p244 = pneg %p116
        %p245 = pneg %p113
        %p246 = pneg %p137
        %p247 = pneg %p134
        %p248 = pneg %p158
        %p249 = pneg %p155
        %p250 = pneg %p186
        %p251 = pneg %p183
        %s252 = sand.u32 %s173, 1
        %s253 = scalar_lea.sflag [#allocation3], %s252
        %s254 = sand.u32 %s173, 1
        %s255 = smul.addr %s254, 8
        %s256 = scalar_lea.vmem [#allocation2], %s255
        %p257 = scmp.lt.s32.totalorder %s24, 1
        %s258 = scalar_select %p257, %s24, 1
        %s259 = smul.addr %s258, 2
        %s260 = scalar_lea.vmem %s0, %s259
        %v262 = vld [vmem:[%s1] sm:$0xf]
        %v263 = vld [vmem:[%s260] sm:$0x3]
        %s264 = scalar_lea.vmem %s1, 4
        %v265 = vld [vmem:[%s264] sm:$0xf]
        %v268 = vunpack.c.l.s4 1983009808
        %v269 = vunpack.c.0.s8 %v268
        %v270 = vlaneseq
        %v271 = vshrl.u32 %v270, 7
        %v272 = vsub.s32 %v269, %v271
        %v273 = vrot.slane %v263, %v272
        %274 = vrot.lane.b32.xlu0 %v273, 127
        %v275 = vpop.permute.xlu0 %274
        %vm276 = vcmask 31744
        %v278 = vsel %vm276, %v265, 0
        %vm280 = vcmask 1041408
        %v282 = vsel %vm280, %v275, 0
        %284 = vmatprep.subr.bf16.mxu0 0
        %285 = vmatpush1.bf16.msra.mxu0 %v282
        %286 = vmatprep.subr.bf16.mxu0 0
        %287 = vmatpush1.bf16.msra.mxu0 0
        %288 = vmatprep.subr.bf16.mxu0 0
        %289 = vmatpush1.bf16.msra.mxu0 0
        %290 = vmatprep.subr.bf16.mxu0 0
        %291 = vmatpush1.bf16.msra.mxu0 0
        %292 = vmatprep.subr.bf16.mxu0 0
        %293 = vmatpush1.bf16.msra.mxu0 0
        %294 = vmatprep.subr.bf16.mxu0 0
        %295 = vmatpush1.bf16.msra.mxu0 0
        %296 = vmatprep.subr.bf16.mxu0 0
        %297 = vmatpush1.bf16.msra.mxu0 0
        %298 = vmatprep.subr.bf16.mxu0 0
        %299 = vmatpush1.bf16.msra.mxu0 0
        %300 = vmatprep.subr.bf16.mxu0 0
        %301 = vmatpush1.bf16.msra.mxu0 0
        %302 = vmatprep.subr.bf16.mxu0 0
        %303 = vmatpush1.bf16.msra.mxu0 0
        %304 = vmatprep.subr.bf16.mxu0 0
        %305 = vmatpush1.bf16.msra.mxu0 0
        %306 = vmatprep.subr.bf16.mxu0 0
        %307 = vmatpush1.bf16.msra.mxu0 0
        %308 = vmatprep.subr.bf16.mxu0 0
        %309 = vmatpush1.bf16.msra.mxu0 0
        %310 = vmatprep.subr.bf16.mxu0 0
        %311 = vmatpush1.bf16.msra.mxu0 0
        %312 = vmatprep.subr.bf16.mxu0 0
        %313 = vmatpush1.bf16.msra.mxu0 0
        %314 = vmatprep.subr.bf16.mxu0 0
        %315 = vmatpush1.bf16.msra.mxu0 0
        %316 = vmatprep.mubr.bf16.mxu0 0
        %317 = vmatmul.mubr.bf16.gmra.mrb[0].mxu0 %v278
        %v318 = vpop.f32.mrb[0].mxu0
        %v319 = vadd.f32 0.0, %v318
        %v320 = vpop.f32.mrb[0].mxu0
        %v321 = vpop.f32.mrb[0].mxu0
        %v322 = vpop.f32.mrb[0].mxu0
        %323 = vdwg.mxu0
        %v325 = vsel %vm276, %v262, 0
        %v328 = vsel %vm280, %v263, 0
        %330 = vmatprep.subr.bf16.mxu0 0
        %331 = vmatpush1.bf16.msra.mxu0 %v328
        %332 = vmatprep.subr.bf16.mxu0 0
        %333 = vmatpush1.bf16.msra.mxu0 0
        %334 = vmatprep.subr.bf16.mxu0 0
        %335 = vmatpush1.bf16.msra.mxu0 0
        %336 = vmatprep.subr.bf16.mxu0 0
        %337 = vmatpush1.bf16.msra.mxu0 0
        %338 = vmatprep.subr.bf16.mxu0 0
        %339 = vmatpush1.bf16.msra.mxu0 0
        %340 = vmatprep.subr.bf16.mxu0 0
        %341 = vmatpush1.bf16.msra.mxu0 0
        %342 = vmatprep.subr.bf16.mxu0 0
        %343 = vmatpush1.bf16.msra.mxu0 0
        %344 = vmatprep.subr.bf16.mxu0 0
        %345 = vmatpush1.bf16.msra.mxu0 0
        %346 = vmatprep.subr.bf16.mxu0 0
        %347 = vmatpush1.bf16.msra.mxu0 0
        %348 = vmatprep.subr.bf16.mxu0 0
        %349 = vmatpush1.bf16.msra.mxu0 0
        %350 = vmatprep.subr.bf16.mxu0 0
        %351 = vmatpush1.bf16.msra.mxu0 0
        %352 = vmatprep.subr.bf16.mxu0 0
        %353 = vmatpush1.bf16.msra.mxu0 0
        %354 = vmatprep.subr.bf16.mxu0 0
        %355 = vmatpush1.bf16.msra.mxu0 0
        %356 = vmatprep.subr.bf16.mxu0 0
        %357 = vmatpush1.bf16.msra.mxu0 0
        %358 = vmatprep.subr.bf16.mxu0 0
        %359 = vmatpush1.bf16.msra.mxu0 0
        %360 = vmatprep.subr.bf16.mxu0 0
        %361 = vmatpush1.bf16.msra.mxu0 0
        %362 = vmatprep.mubr.bf16.mxu0 0
        %363 = vmatmul.mubr.bf16.gmra.mrb[0].mxu0 %v325
        %v364 = vpop.f32.mrb[0].mxu0
        %v365 = vadd.f32 %v319, %v364
        %v366 = vpop.f32.mrb[0].mxu0
        %v367 = vpop.f32.mrb[0].mxu0
        %v368 = vpop.f32.mrb[0].mxu0
        %369 = vdwg.mxu0
        %s370 = scalar_lea.vmem %s1, 8
        %v371 = vld [vmem:[%s370] sm:$0xf]
        %v372 = vld [vmem:[%s260] sm:$0x3]
        %v375 = vunpack.c.l.s4 1983009808
        %v376 = vunpack.c.0.s8 %v375
        %v377 = vlaneseq
        %v378 = vshrl.u32 %v377, 7
        %v379 = vsub.s32 %v376, %v378
        %v380 = vrot.slane %v372, %v379
        %381 = vrot.lane.b32.xlu0 %v380, 126
        %v382 = vpop.permute.xlu0 %381
        %v384 = vsel %vm276, %v371, 0
        %v387 = vsel %vm280, %v382, 0
        %389 = vmatprep.subr.bf16.mxu0 0
        %390 = vmatpush1.bf16.msra.mxu0 %v387
        %391 = vmatprep.subr.bf16.mxu0 0
        %392 = vmatpush1.bf16.msra.mxu0 0
        %393 = vmatprep.subr.bf16.mxu0 0
        %394 = vmatpush1.bf16.msra.mxu0 0
        %395 = vmatprep.subr.bf16.mxu0 0
        %396 = vmatpush1.bf16.msra.mxu0 0
        %397 = vmatprep.subr.bf16.mxu0 0
        %398 = vmatpush1.bf16.msra.mxu0 0
        %399 = vmatprep.subr.bf16.mxu0 0
        %400 = vmatpush1.bf16.msra.mxu0 0
        %401 = vmatprep.subr.bf16.mxu0 0
        %402 = vmatpush1.bf16.msra.mxu0 0
        %403 = vmatprep.subr.bf16.mxu0 0
        %404 = vmatpush1.bf16.msra.mxu0 0
        %405 = vmatprep.subr.bf16.mxu0 0
        %406 = vmatpush1.bf16.msra.mxu0 0
        %407 = vmatprep.subr.bf16.mxu0 0
        %408 = vmatpush1.bf16.msra.mxu0 0
        %409 = vmatprep.subr.bf16.mxu0 0
        %410 = vmatpush1.bf16.msra.mxu0 0
        %411 = vmatprep.subr.bf16.mxu0 0
        %412 = vmatpush1.bf16.msra.mxu0 0
        %413 = vmatprep.subr.bf16.mxu0 0
        %414 = vmatpush1.bf16.msra.mxu0 0
        %415 = vmatprep.subr.bf16.mxu0 0
        %416 = vmatpush1.bf16.msra.mxu0 0
        %417 = vmatprep.subr.bf16.mxu0 0
        %418 = vmatpush1.bf16.msra.mxu0 0
        %419 = vmatprep.subr.bf16.mxu0 0
        %420 = vmatpush1.bf16.msra.mxu0 0
        %421 = vmatprep.mubr.bf16.mxu0 0
        %422 = vmatmul.mubr.bf16.gmra.mrb[0].mxu0 %v384
        %v423 = vpop.f32.mrb[0].mxu0
        %v424 = vadd.f32 0.0, %v423
        %v425 = vpop.f32.mrb[0].mxu0
        %v426 = vpop.f32.mrb[0].mxu0
        %v427 = vpop.f32.mrb[0].mxu0
        %428 = vdwg.mxu0
        %v429 = vadd.f32 %v365, %v424
        %s430 = scalar_lea.vmem %s1, 12
        %v431 = vld [vmem:[%s430] sm:$0xf]
        %v432 = vld [vmem:[%s260] sm:$0x3]
        %v435 = vunpack.c.l.s4 1983009808
        %v436 = vunpack.c.0.s8 %v435
        %v437 = vlaneseq
        %v438 = vshrl.u32 %v437, 7
        %v439 = vsub.s32 %v436, %v438
        %v440 = vrot.slane %v432, %v439
        %441 = vrot.lane.b32.xlu0 %v440, 125
        %v442 = vpop.permute.xlu0 %441
        %v444 = vsel %vm276, %v431, 0
        %v447 = vsel %vm280, %v442, 0
        %449 = vmatprep.subr.bf16.mxu0 0
        %450 = vmatpush1.bf16.msra.mxu0 %v447
        %451 = vmatprep.subr.bf16.mxu0 0
        %452 = vmatpush1.bf16.msra.mxu0 0
        %453 = vmatprep.subr.bf16.mxu0 0
        %454 = vmatpush1.bf16.msra.mxu0 0
        %455 = vmatprep.subr.bf16.mxu0 0
        %456 = vmatpush1.bf16.msra.mxu0 0
        %457 = vmatprep.subr.bf16.mxu0 0
        %458 = vmatpush1.bf16.msra.mxu0 0
        %459 = vmatprep.subr.bf16.mxu0 0
        %460 = vmatpush1.bf16.msra.mxu0 0
        %461 = vmatprep.subr.bf16.mxu0 0
        %462 = vmatpush1.bf16.msra.mxu0 0
        %463 = vmatprep.subr.bf16.mxu0 0
        %464 = vmatpush1.bf16.msra.mxu0 0
        %465 = vmatprep.subr.bf16.mxu0 0
        %466 = vmatpush1.bf16.msra.mxu0 0
        %467 = vmatprep.subr.bf16.mxu0 0
        %468 = vmatpush1.bf16.msra.mxu0 0
        %469 = vmatprep.subr.bf16.mxu0 0
        %470 = vmatpush1.bf16.msra.mxu0 0
        %471 = vmatprep.subr.bf16.mxu0 0
        %472 = vmatpush1.bf16.msra.mxu0 0
        %473 = vmatprep.subr.bf16.mxu0 0
        %474 = vmatpush1.bf16.msra.mxu0 0
        %475 = vmatprep.subr.bf16.mxu0 0
        %476 = vmatpush1.bf16.msra.mxu0 0
        %477 = vmatprep.subr.bf16.mxu0 0
        %478 = vmatpush1.bf16.msra.mxu0 0
        %479 = vmatprep.subr.bf16.mxu0 0
        %480 = vmatpush1.bf16.msra.mxu0 0
        %481 = vmatprep.mubr.bf16.mxu0 0
        %482 = vmatmul.mubr.bf16.gmra.mrb[0].mxu0 %v444
        %v483 = vpop.f32.mrb[0].mxu0
        %v484 = vadd.f32 0.0, %v483
        %v485 = vpop.f32.mrb[0].mxu0
        %v486 = vpop.f32.mrb[0].mxu0
        %v487 = vpop.f32.mrb[0].mxu0
        %488 = vdwg.mxu0
        %v489 = vadd.f32 %v429, %v484
        %s490 = scalar_lea.vmem %s1, 16
        %v491 = vld [vmem:[%s490] sm:$0xf]
        %v492 = vld [vmem:[%s260] sm:$0x3]
        %v495 = vunpack.c.l.s4 1983009808
        %v496 = vunpack.c.0.s8 %v495
        %v497 = vlaneseq
        %v498 = vshrl.u32 %v497, 7
        %v499 = vsub.s32 %v496, %v498
        %v500 = vrot.slane %v492, %v499
        %501 = vrot.lane.b32.xlu0 %v500, 124
        %v502 = vpop.permute.xlu0 %501
        %v504 = vsel %vm276, %v491, 0
        %v507 = vsel %vm280, %v502, 0
        %509 = vmatprep.subr.bf16.mxu0 0
        %510 = vmatpush1.bf16.msra.mxu0 %v507
        %511 = vmatprep.subr.bf16.mxu0 0
        %512 = vmatpush1.bf16.msra.mxu0 0
        %513 = vmatprep.subr.bf16.mxu0 0
        %514 = vmatpush1.bf16.msra.mxu0 0
        %515 = vmatprep.subr.bf16.mxu0 0
        %516 = vmatpush1.bf16.msra.mxu0 0
        %517 = vmatprep.subr.bf16.mxu0 0
        %518 = vmatpush1.bf16.msra.mxu0 0
        %519 = vmatprep.subr.bf16.mxu0 0
        %520 = vmatpush1.bf16.msra.mxu0 0
        %521 = vmatprep.subr.bf16.mxu0 0
        %522 = vmatpush1.bf16.msra.mxu0 0
        %523 = vmatprep.subr.bf16.mxu0 0
        %524 = vmatpush1.bf16.msra.mxu0 0
        %525 = vmatprep.subr.bf16.mxu0 0
        %526 = vmatpush1.bf16.msra.mxu0 0
        %527 = vmatprep.subr.bf16.mxu0 0
        %528 = vmatpush1.bf16.msra.mxu0 0
        %529 = vmatprep.subr.bf16.mxu0 0
        %530 = vmatpush1.bf16.msra.mxu0 0
        %531 = vmatprep.subr.bf16.mxu0 0
        %532 = vmatpush1.bf16.msra.mxu0 0
        %533 = vmatprep.subr.bf16.mxu0 0
        %534 = vmatpush1.bf16.msra.mxu0 0
        %535 = vmatprep.subr.bf16.mxu0 0
        %536 = vmatpush1.bf16.msra.mxu0 0
        %537 = vmatprep.subr.bf16.mxu0 0
        %538 = vmatpush1.bf16.msra.mxu0 0
        %539 = vmatprep.subr.bf16.mxu0 0
        %540 = vmatpush1.bf16.msra.mxu0 0
        %541 = vmatprep.mubr.bf16.mxu0 0
        %542 = vmatmul.mubr.bf16.gmra.mrb[0].mxu0 %v504
        %v543 = vpop.f32.mrb[0].mxu0
        %v544 = vadd.f32 0.0, %v543
        %v545 = vpop.f32.mrb[0].mxu0
        %v546 = vpop.f32.mrb[0].mxu0
        %v547 = vpop.f32.mrb[0].mxu0
        %548 = vdwg.mxu0
        %v549 = vadd.f32 %v489, %v544
        %s550 = scalar_lea.vmem %s1, 20
        %v551 = vld [vmem:[%s550] sm:$0xf]
        %v552 = vld [vmem:[%s260] sm:$0x3]
        %v555 = vunpack.c.l.s4 1983009808
        %v556 = vunpack.c.0.s8 %v555
        %v557 = vlaneseq
        %v558 = vshrl.u32 %v557, 7
        %v559 = vsub.s32 %v556, %v558
        %v560 = vrot.slane %v552, %v559
        %561 = vrot.lane.b32.xlu0 %v560, 123
        %v562 = vpop.permute.xlu0 %561
        %v564 = vsel %vm276, %v551, 0
        %v567 = vsel %vm280, %v562, 0
        %569 = vmatprep.subr.bf16.mxu0 0
        %570 = vmatpush1.bf16.msra.mxu0 %v567
        %571 = vmatprep.subr.bf16.mxu0 0
        %572 = vmatpush1.bf16.msra.mxu0 0
        %573 = vmatprep.subr.bf16.mxu0 0
        %574 = vmatpush1.bf16.msra.mxu0 0
        %575 = vmatprep.subr.bf16.mxu0 0
        %576 = vmatpush1.bf16.msra.mxu0 0
        %577 = vmatprep.subr.bf16.mxu0 0
        %578 = vmatpush1.bf16.msra.mxu0 0
        %579 = vmatprep.subr.bf16.mxu0 0
        %580 = vmatpush1.bf16.msra.mxu0 0
        %581 = vmatprep.subr.bf16.mxu0 0
        %582 = vmatpush1.bf16.msra.mxu0 0
        %583 = vmatprep.subr.bf16.mxu0 0
        %584 = vmatpush1.bf16.msra.mxu0 0
        %585 = vmatprep.subr.bf16.mxu0 0
        %586 = vmatpush1.bf16.msra.mxu0 0
        %587 = vmatprep.subr.bf16.mxu0 0
        %588 = vmatpush1.bf16.msra.mxu0 0
        %589 = vmatprep.subr.bf16.mxu0 0
        %590 = vmatpush1.bf16.msra.mxu0 0
        %591 = vmatprep.subr.bf16.mxu0 0
        %592 = vmatpush1.bf16.msra.mxu0 0
        %593 = vmatprep.subr.bf16.mxu0 0
        %594 = vmatpush1.bf16.msra.mxu0 0
        %595 = vmatprep.subr.bf16.mxu0 0
        %596 = vmatpush1.bf16.msra.mxu0 0
        %597 = vmatprep.subr.bf16.mxu0 0
        %598 = vmatpush1.bf16.msra.mxu0 0
        %599 = vmatprep.subr.bf16.mxu0 0
        %600 = vmatpush1.bf16.msra.mxu0 0
        %601 = vmatprep.mubr.bf16.mxu0 0
        %602 = vmatmul.mubr.bf16.gmra.mrb[0].mxu0 %v564
        %v603 = vpop.f32.mrb[0].mxu0
        %v604 = vadd.f32 0.0, %v603
        %v605 = vpop.f32.mrb[0].mxu0
        %v606 = vpop.f32.mrb[0].mxu0
        %v607 = vpop.f32.mrb[0].mxu0
        %608 = vdwg.mxu0
        %v609 = vadd.f32 %v549, %v604
        %s610 = scalar_lea.vmem %s1, 24
        %v611 = vld [vmem:[%s610] sm:$0xf]
        %v612 = vld [vmem:[%s260] sm:$0x3]
        %v615 = vunpack.c.l.s4 1983009808
        %v616 = vunpack.c.0.s8 %v615
        %v617 = vlaneseq
        %v618 = vshrl.u32 %v617, 7
        %v619 = vsub.s32 %v616, %v618
        %v620 = vrot.slane %v612, %v619
        %621 = vrot.lane.b32.xlu0 %v620, 122
        %v622 = vpop.permute.xlu0 %621
        %v624 = vsel %vm276, %v611, 0
        %v627 = vsel %vm280, %v622, 0
        %629 = vmatprep.subr.bf16.mxu0 0
        %630 = vmatpush1.bf16.msra.mxu0 %v627
        %631 = vmatprep.subr.bf16.mxu0 0
        %632 = vmatpush1.bf16.msra.mxu0 0
        %633 = vmatprep.subr.bf16.mxu0 0
        %634 = vmatpush1.bf16.msra.mxu0 0
        %635 = vmatprep.subr.bf16.mxu0 0
        %636 = vmatpush1.bf16.msra.mxu0 0
        %637 = vmatprep.subr.bf16.mxu0 0
        %638 = vmatpush1.bf16.msra.mxu0 0
        %639 = vmatprep.subr.bf16.mxu0 0
        %640 = vmatpush1.bf16.msra.mxu0 0
        %641 = vmatprep.subr.bf16.mxu0 0
        %642 = vmatpush1.bf16.msra.mxu0 0
        %643 = vmatprep.subr.bf16.mxu0 0
        %644 = vmatpush1.bf16.msra.mxu0 0
        %645 = vmatprep.subr.bf16.mxu0 0
        %646 = vmatpush1.bf16.msra.mxu0 0
        %647 = vmatprep.subr.bf16.mxu0 0
        %648 = vmatpush1.bf16.msra.mxu0 0
        %649 = vmatprep.subr.bf16.mxu0 0
        %650 = vmatpush1.bf16.msra.mxu0 0
        %651 = vmatprep.subr.bf16.mxu0 0
        %652 = vmatpush1.bf16.msra.mxu0 0
        %653 = vmatprep.subr.bf16.mxu0 0
        %654 = vmatpush1.bf16.msra.mxu0 0
        %655 = vmatprep.subr.bf16.mxu0 0
        %656 = vmatpush1.bf16.msra.mxu0 0
        %657 = vmatprep.subr.bf16.mxu0 0
        %658 = vmatpush1.bf16.msra.mxu0 0
        %659 = vmatprep.subr.bf16.mxu0 0
        %660 = vmatpush1.bf16.msra.mxu0 0
        %661 = vmatprep.mubr.bf16.mxu0 0
        %662 = vmatmul.mubr.bf16.gmra.mrb[0].mxu0 %v624
        %v663 = vpop.f32.mrb[0].mxu0
        %v664 = vadd.f32 0.0, %v663
        %v665 = vpop.f32.mrb[0].mxu0
        %v666 = vpop.f32.mrb[0].mxu0
        %v667 = vpop.f32.mrb[0].mxu0
        %668 = vdwg.mxu0
        %v669 = vadd.f32 %v609, %v664
        %v670 = vlaneseq
        %v671 = vand.u32 %v670, 127
        %s672 = smul.u32 %s25, 16
        %s673 = ssub.s32 %s672, 3
        %v674 = vstv %s673
        %v675 = vadd.s32 %v671, %v674
        %vm676 = vcmp.ge.s32.totalorder %v675, 0
        %vm677 = vcmp.lt.s32.totalorder %v675, 16
        %vm678 = vmand %vm676, %vm677
        %v679 = vld [vmem:[%s4] sm:$0xff]
        %681 = vset.pattern.permute.xlu0 0
        %682 = vperm.xlu0 %681, %v679
        %v683 = vpop.permute.xlu0 %682
        %v685 = vadd.f32 %v669, %v683
        %v686 = vmax.f32 %v685, 0.0
        %v687 = vsel %vm678, 1, 0
        %vm688 = vcmp.eq.s32.totalorder %v687, 1
        %v689 = vsel %vm688, %v686, 0.0
        %v690 = vpack.c.bf16 %v689, %v689
        %v691 = vld [vmem:[%s2] sm:$0xf]
        %s692 = scalar_lea.vmem %s2, 4
        %v693 = vld [vmem:[%s692] sm:$0xf]
        %695 = vrot.lane.b32.xlu0 %v690, 127
        %v696 = vpop.permute.xlu0 %695
        %vm697 = vcmask 64512
        %v699 = vsel %vm697, %v693, 0
        %vm701 = vcmask 1043456
        %v703 = vsel %vm701, %v696, 0
        %705 = vmatprep.subr.bf16.mxu0 0
        %706 = vmatpush1.bf16.msra.mxu0 %v703
        %707 = vmatprep.subr.bf16.mxu0 0
        %708 = vmatpush1.bf16.msra.mxu0 0
        %709 = vmatprep.subr.bf16.mxu0 0
        %710 = vmatpush1.bf16.msra.mxu0 0
        %711 = vmatprep.subr.bf16.mxu0 0
        %712 = vmatpush1.bf16.msra.mxu0 0
        %713 = vmatprep.subr.bf16.mxu0 0
        %714 = vmatpush1.bf16.msra.mxu0 0
        %715 = vmatprep.subr.bf16.mxu0 0
        %716 = vmatpush1.bf16.msra.mxu0 0
        %717 = vmatprep.subr.bf16.mxu0 0
        %718 = vmatpush1.bf16.msra.mxu0 0
        %719 = vmatprep.subr.bf16.mxu0 0
        %720 = vmatpush1.bf16.msra.mxu0 0
        %721 = vmatprep.subr.bf16.mxu0 0
        %722 = vmatpush1.bf16.msra.mxu0 0
        %723 = vmatprep.subr.bf16.mxu0 0
        %724 = vmatpush1.bf16.msra.mxu0 0
        %725 = vmatprep.subr.bf16.mxu0 0
        %726 = vmatpush1.bf16.msra.mxu0 0
        %727 = vmatprep.subr.bf16.mxu0 0
        %728 = vmatpush1.bf16.msra.mxu0 0
        %729 = vmatprep.subr.bf16.mxu0 0
        %730 = vmatpush1.bf16.msra.mxu0 0
        %731 = vmatprep.subr.bf16.mxu0 0
        %732 = vmatpush1.bf16.msra.mxu0 0
        %733 = vmatprep.subr.bf16.mxu0 0
        %734 = vmatpush1.bf16.msra.mxu0 0
        %735 = vmatprep.subr.bf16.mxu0 0
        %736 = vmatpush1.bf16.msra.mxu0 0
        %737 = vmatprep.mubr.bf16.mxu0 0
        %738 = vmatmul.mubr.bf16.gmra.mrb[0].mxu0 %v699
        %v739 = vpop.f32.mrb[0].mxu0
        %v740 = vadd.f32 0.0, %v739
        %v741 = vpop.f32.mrb[0].mxu0
        %v742 = vpop.f32.mrb[0].mxu0
        %v743 = vpop.f32.mrb[0].mxu0
        %744 = vdwg.mxu0
        %v746 = vsel %vm697, %v691, 0
        %v749 = vsel %vm701, %v690, 0
        %751 = vmatprep.subr.bf16.mxu0 0
        %752 = vmatpush1.bf16.msra.mxu0 %v749
        %753 = vmatprep.subr.bf16.mxu0 0
        %754 = vmatpush1.bf16.msra.mxu0 0
        %755 = vmatprep.subr.bf16.mxu0 0
        %756 = vmatpush1.bf16.msra.mxu0 0
        %757 = vmatprep.subr.bf16.mxu0 0
        %758 = vmatpush1.bf16.msra.mxu0 0
        %759 = vmatprep.subr.bf16.mxu0 0
        %760 = vmatpush1.bf16.msra.mxu0 0
        %761 = vmatprep.subr.bf16.mxu0 0
        %762 = vmatpush1.bf16.msra.mxu0 0
        %763 = vmatprep.subr.bf16.mxu0 0
        %764 = vmatpush1.bf16.msra.mxu0 0
        %765 = vmatprep.subr.bf16.mxu0 0
        %766 = vmatpush1.bf16.msra.mxu0 0
        %767 = vmatprep.subr.bf16.mxu0 0
        %768 = vmatpush1.bf16.msra.mxu0 0
        %769 = vmatprep.subr.bf16.mxu0 0
        %770 = vmatpush1.bf16.msra.mxu0 0
        %771 = vmatprep.subr.bf16.mxu0 0
        %772 = vmatpush1.bf16.msra.mxu0 0
        %773 = vmatprep.subr.bf16.mxu0 0
        %774 = vmatpush1.bf16.msra.mxu0 0
        %775 = vmatprep.subr.bf16.mxu0 0
        %776 = vmatpush1.bf16.msra.mxu0 0
        %777 = vmatprep.subr.bf16.mxu0 0
        %778 = vmatpush1.bf16.msra.mxu0 0
        %779 = vmatprep.subr.bf16.mxu0 0
        %780 = vmatpush1.bf16.msra.mxu0 0
        %781 = vmatprep.subr.bf16.mxu0 0
        %782 = vmatpush1.bf16.msra.mxu0 0
        %783 = vmatprep.mubr.bf16.mxu0 0
        %784 = vmatmul.mubr.bf16.gmra.mrb[0].mxu0 %v746
        %v785 = vpop.f32.mrb[0].mxu0
        %v786 = vadd.f32 %v740, %v785
        %v787 = vpop.f32.mrb[0].mxu0
        %v788 = vpop.f32.mrb[0].mxu0
        %v789 = vpop.f32.mrb[0].mxu0
        %790 = vdwg.mxu0
        %s791 = scalar_lea.vmem %s2, 8
        %v792 = vld [vmem:[%s791] sm:$0xf]
        %793 = vrot.lane.b32.xlu0 %v690, 126
        %v794 = vpop.permute.xlu0 %793
        %v796 = vsel %vm697, %v792, 0
        %v799 = vsel %vm701, %v794, 0
        %801 = vmatprep.subr.bf16.mxu0 0
        %802 = vmatpush1.bf16.msra.mxu0 %v799
        %803 = vmatprep.subr.bf16.mxu0 0
        %804 = vmatpush1.bf16.msra.mxu0 0
        %805 = vmatprep.subr.bf16.mxu0 0
        %806 = vmatpush1.bf16.msra.mxu0 0
        %807 = vmatprep.subr.bf16.mxu0 0
        %808 = vmatpush1.bf16.msra.mxu0 0
        %809 = vmatprep.subr.bf16.mxu0 0
        %810 = vmatpush1.bf16.msra.mxu0 0
        %811 = vmatprep.subr.bf16.mxu0 0
        %812 = vmatpush1.bf16.msra.mxu0 0
        %813 = vmatprep.subr.bf16.mxu0 0
        %814 = vmatpush1.bf16.msra.mxu0 0
        %815 = vmatprep.subr.bf16.mxu0 0
        %816 = vmatpush1.bf16.msra.mxu0 0
        %817 = vmatprep.subr.bf16.mxu0 0
        %818 = vmatpush1.bf16.msra.mxu0 0
        %819 = vmatprep.subr.bf16.mxu0 0
        %820 = vmatpush1.bf16.msra.mxu0 0
        %821 = vmatprep.subr.bf16.mxu0 0
        %822 = vmatpush1.bf16.msra.mxu0 0
        %823 = vmatprep.subr.bf16.mxu0 0
        %824 = vmatpush1.bf16.msra.mxu0 0
        %825 = vmatprep.subr.bf16.mxu0 0
        %826 = vmatpush1.bf16.msra.mxu0 0
        %827 = vmatprep.subr.bf16.mxu0 0
        %828 = vmatpush1.bf16.msra.mxu0 0
        %829 = vmatprep.subr.bf16.mxu0 0
        %830 = vmatpush1.bf16.msra.mxu0 0
        %831 = vmatprep.subr.bf16.mxu0 0
        %832 = vmatpush1.bf16.msra.mxu0 0
        %833 = vmatprep.mubr.bf16.mxu0 0
        %834 = vmatmul.mubr.bf16.gmra.mrb[0].mxu0 %v796
        %v835 = vpop.f32.mrb[0].mxu0
        %v836 = vadd.f32 0.0, %v835
        %v837 = vpop.f32.mrb[0].mxu0
        %v838 = vpop.f32.mrb[0].mxu0
        %v839 = vpop.f32.mrb[0].mxu0
        %840 = vdwg.mxu0
        %v841 = vadd.f32 %v786, %v836
        %s842 = scalar_lea.vmem %s2, 12
        %v843 = vld [vmem:[%s842] sm:$0xf]
        %844 = vrot.lane.b32.xlu0 %v690, 125
        %v845 = vpop.permute.xlu0 %844
        %v847 = vsel %vm697, %v843, 0
        %v850 = vsel %vm701, %v845, 0
        %852 = vmatprep.subr.bf16.mxu0 0
        %853 = vmatpush1.bf16.msra.mxu0 %v850
        %854 = vmatprep.subr.bf16.mxu0 0
        %855 = vmatpush1.bf16.msra.mxu0 0
        %856 = vmatprep.subr.bf16.mxu0 0
        %857 = vmatpush1.bf16.msra.mxu0 0
        %858 = vmatprep.subr.bf16.mxu0 0
        %859 = vmatpush1.bf16.msra.mxu0 0
        %860 = vmatprep.subr.bf16.mxu0 0
        %861 = vmatpush1.bf16.msra.mxu0 0
        %862 = vmatprep.subr.bf16.mxu0 0
        %863 = vmatpush1.bf16.msra.mxu0 0
        %864 = vmatprep.subr.bf16.mxu0 0
        %865 = vmatpush1.bf16.msra.mxu0 0
        %866 = vmatprep.subr.bf16.mxu0 0
        %867 = vmatpush1.bf16.msra.mxu0 0
        %868 = vmatprep.subr.bf16.mxu0 0
        %869 = vmatpush1.bf16.msra.mxu0 0
        %870 = vmatprep.subr.bf16.mxu0 0
        %871 = vmatpush1.bf16.msra.mxu0 0
        %872 = vmatprep.subr.bf16.mxu0 0
        %873 = vmatpush1.bf16.msra.mxu0 0
        %874 = vmatprep.subr.bf16.mxu0 0
        %875 = vmatpush1.bf16.msra.mxu0 0
        %876 = vmatprep.subr.bf16.mxu0 0
        %877 = vmatpush1.bf16.msra.mxu0 0
        %878 = vmatprep.subr.bf16.mxu0 0
        %879 = vmatpush1.bf16.msra.mxu0 0
        %880 = vmatprep.subr.bf16.mxu0 0
        %881 = vmatpush1.bf16.msra.mxu0 0
        %882 = vmatprep.subr.bf16.mxu0 0
        %883 = vmatpush1.bf16.msra.mxu0 0
        %884 = vmatprep.mubr.bf16.mxu0 0
        %885 = vmatmul.mubr.bf16.gmra.mrb[0].mxu0 %v847
        %v886 = vpop.f32.mrb[0].mxu0
        %v887 = vadd.f32 0.0, %v886
        %v888 = vpop.f32.mrb[0].mxu0
        %v889 = vpop.f32.mrb[0].mxu0
        %v890 = vpop.f32.mrb[0].mxu0
        %891 = vdwg.mxu0
        %v892 = vadd.f32 %v841, %v887
        %s893 = scalar_lea.vmem %s2, 16
        %v894 = vld [vmem:[%s893] sm:$0xf]
        %895 = vrot.lane.b32.xlu0 %v690, 124
        %v896 = vpop.permute.xlu0 %895
        %v898 = vsel %vm697, %v894, 0
        %v901 = vsel %vm701, %v896, 0
        %903 = vmatprep.subr.bf16.mxu0 0
        %904 = vmatpush1.bf16.msra.mxu0 %v901
        %905 = vmatprep.subr.bf16.mxu0 0
        %906 = vmatpush1.bf16.msra.mxu0 0
        %907 = vmatprep.subr.bf16.mxu0 0
        %908 = vmatpush1.bf16.msra.mxu0 0
        %909 = vmatprep.subr.bf16.mxu0 0
        %910 = vmatpush1.bf16.msra.mxu0 0
        %911 = vmatprep.subr.bf16.mxu0 0
        %912 = vmatpush1.bf16.msra.mxu0 0
        %913 = vmatprep.subr.bf16.mxu0 0
        %914 = vmatpush1.bf16.msra.mxu0 0
        %915 = vmatprep.subr.bf16.mxu0 0
        %916 = vmatpush1.bf16.msra.mxu0 0
        %917 = vmatprep.subr.bf16.mxu0 0
        %918 = vmatpush1.bf16.msra.mxu0 0
        %919 = vmatprep.subr.bf16.mxu0 0
        %920 = vmatpush1.bf16.msra.mxu0 0
        %921 = vmatprep.subr.bf16.mxu0 0
        %922 = vmatpush1.bf16.msra.mxu0 0
        %923 = vmatprep.subr.bf16.mxu0 0
        %924 = vmatpush1.bf16.msra.mxu0 0
        %925 = vmatprep.subr.bf16.mxu0 0
        %926 = vmatpush1.bf16.msra.mxu0 0
        %927 = vmatprep.subr.bf16.mxu0 0
        %928 = vmatpush1.bf16.msra.mxu0 0
        %929 = vmatprep.subr.bf16.mxu0 0
        %930 = vmatpush1.bf16.msra.mxu0 0
        %931 = vmatprep.subr.bf16.mxu0 0
        %932 = vmatpush1.bf16.msra.mxu0 0
        %933 = vmatprep.subr.bf16.mxu0 0
        %934 = vmatpush1.bf16.msra.mxu0 0
        %935 = vmatprep.mubr.bf16.mxu0 0
        %936 = vmatmul.mubr.bf16.gmra.mrb[0].mxu0 %v898
        %v937 = vpop.f32.mrb[0].mxu0
        %v938 = vadd.f32 0.0, %v937
        %v939 = vpop.f32.mrb[0].mxu0
        %v940 = vpop.f32.mrb[0].mxu0
        %v941 = vpop.f32.mrb[0].mxu0
        %942 = vdwg.mxu0
        %v943 = vadd.f32 %v892, %v938
        %s944 = scalar_lea.vmem %s2, 20
        %v945 = vld [vmem:[%s944] sm:$0xf]
        %946 = vrot.lane.b32.xlu0 %v690, 123
        %v947 = vpop.permute.xlu0 %946
        %v949 = vsel %vm697, %v945, 0
        %v952 = vsel %vm701, %v947, 0
        %954 = vmatprep.subr.bf16.mxu0 0
        %955 = vmatpush1.bf16.msra.mxu0 %v952
        %956 = vmatprep.subr.bf16.mxu0 0
        %957 = vmatpush1.bf16.msra.mxu0 0
        %958 = vmatprep.subr.bf16.mxu0 0
        %959 = vmatpush1.bf16.msra.mxu0 0
        %960 = vmatprep.subr.bf16.mxu0 0
        %961 = vmatpush1.bf16.msra.mxu0 0
        %962 = vmatprep.subr.bf16.mxu0 0
        %963 = vmatpush1.bf16.msra.mxu0 0
        %964 = vmatprep.subr.bf16.mxu0 0
        %965 = vmatpush1.bf16.msra.mxu0 0
        %966 = vmatprep.subr.bf16.mxu0 0
        %967 = vmatpush1.bf16.msra.mxu0 0
        %968 = vmatprep.subr.bf16.mxu0 0
        %969 = vmatpush1.bf16.msra.mxu0 0
        %970 = vmatprep.subr.bf16.mxu0 0
        %971 = vmatpush1.bf16.msra.mxu0 0
        %972 = vmatprep.subr.bf16.mxu0 0
        %973 = vmatpush1.bf16.msra.mxu0 0
        %974 = vmatprep.subr.bf16.mxu0 0
        %975 = vmatpush1.bf16.msra.mxu0 0
        %976 = vmatprep.subr.bf16.mxu0 0
        %977 = vmatpush1.bf16.msra.mxu0 0
        %978 = vmatprep.subr.bf16.mxu0 0
        %979 = vmatpush1.bf16.msra.mxu0 0
        %980 = vmatprep.subr.bf16.mxu0 0
        %981 = vmatpush1.bf16.msra.mxu0 0
        %982 = vmatprep.subr.bf16.mxu0 0
        %983 = vmatpush1.bf16.msra.mxu0 0
        %984 = vmatprep.subr.bf16.mxu0 0
        %985 = vmatpush1.bf16.msra.mxu0 0
        %986 = vmatprep.mubr.bf16.mxu0 0
        %987 = vmatmul.mubr.bf16.gmra.mrb[0].mxu0 %v949
        %v988 = vpop.f32.mrb[0].mxu0
        %v989 = vadd.f32 0.0, %v988
        %v990 = vpop.f32.mrb[0].mxu0
        %v991 = vpop.f32.mrb[0].mxu0
        %v992 = vpop.f32.mrb[0].mxu0
        %993 = vdwg.mxu0
        %v994 = vadd.f32 %v943, %v989
        %s995 = scalar_lea.vmem %s2, 24
        %v996 = vld [vmem:[%s995] sm:$0xf]
        %997 = vrot.lane.b32.xlu0 %v690, 122
        %v998 = vpop.permute.xlu0 %997
        %v1000 = vsel %vm697, %v996, 0
        %v1003 = vsel %vm701, %v998, 0
        %1005 = vmatprep.subr.bf16.mxu0 0
        %1006 = vmatpush1.bf16.msra.mxu0 %v1003
        %1007 = vmatprep.subr.bf16.mxu0 0
        %1008 = vmatpush1.bf16.msra.mxu0 0
        %1009 = vmatprep.subr.bf16.mxu0 0
        %1010 = vmatpush1.bf16.msra.mxu0 0
        %1011 = vmatprep.subr.bf16.mxu0 0
        %1012 = vmatpush1.bf16.msra.mxu0 0
        %1013 = vmatprep.subr.bf16.mxu0 0
        %1014 = vmatpush1.bf16.msra.mxu0 0
        %1015 = vmatprep.subr.bf16.mxu0 0
        %1016 = vmatpush1.bf16.msra.mxu0 0
        %1017 = vmatprep.subr.bf16.mxu0 0
        %1018 = vmatpush1.bf16.msra.mxu0 0
        %1019 = vmatprep.subr.bf16.mxu0 0
        %1020 = vmatpush1.bf16.msra.mxu0 0
        %1021 = vmatprep.subr.bf16.mxu0 0
        %1022 = vmatpush1.bf16.msra.mxu0 0
        %1023 = vmatprep.subr.bf16.mxu0 0
        %1024 = vmatpush1.bf16.msra.mxu0 0
        %1025 = vmatprep.subr.bf16.mxu0 0
        %1026 = vmatpush1.bf16.msra.mxu0 0
        %1027 = vmatprep.subr.bf16.mxu0 0
        %1028 = vmatpush1.bf16.msra.mxu0 0
        %1029 = vmatprep.subr.bf16.mxu0 0
        %1030 = vmatpush1.bf16.msra.mxu0 0
        %1031 = vmatprep.subr.bf16.mxu0 0
        %1032 = vmatpush1.bf16.msra.mxu0 0
        %1033 = vmatprep.subr.bf16.mxu0 0
        %1034 = vmatpush1.bf16.msra.mxu0 0
        %1035 = vmatprep.subr.bf16.mxu0 0
        %1036 = vmatpush1.bf16.msra.mxu0 0
        %1037 = vmatprep.mubr.bf16.mxu0 0
        %1038 = vmatmul.mubr.bf16.gmra.mrb[0].mxu0 %v1000
        %v1039 = vpop.f32.mrb[0].mxu0
        %v1040 = vadd.f32 0.0, %v1039
        %v1041 = vpop.f32.mrb[0].mxu0
        %v1042 = vpop.f32.mrb[0].mxu0
        %v1043 = vpop.f32.mrb[0].mxu0
        %1044 = vdwg.mxu0
        %v1045 = vadd.f32 %v994, %v1040
        %v1046 = vld [vmem:[%s3] sm:$0xf]
        %v1047 = vld [vmem:[%s260] sm:$0x3]
        %v1050 = vunpack.c.l.s4 1983009808
        %v1051 = vunpack.c.0.s8 %v1050
        %v1052 = vlaneseq
        %v1053 = vshrl.u32 %v1052, 7
        %v1054 = vsub.s32 %v1051, %v1053
        %v1055 = vrot.slane %v1047, %v1054
        %1056 = vrot.lane.b32.xlu0 %v1055, 122
        %v1057 = vpop.permute.xlu0 %1056
        %v1059 = vsel %vm276, %v1046, 0
        %v1062 = vsel %vm280, %v1057, 0
        %1064 = vmatprep.subr.bf16.mxu0 0
        %1065 = vmatpush1.bf16.msra.mxu0 %v1062
        %1066 = vmatprep.subr.bf16.mxu0 0
        %1067 = vmatpush1.bf16.msra.mxu0 0
        %1068 = vmatprep.subr.bf16.mxu0 0
        %1069 = vmatpush1.bf16.msra.mxu0 0
        %1070 = vmatprep.subr.bf16.mxu0 0
        %1071 = vmatpush1.bf16.msra.mxu0 0
        %1072 = vmatprep.subr.bf16.mxu0 0
        %1073 = vmatpush1.bf16.msra.mxu0 0
        %1074 = vmatprep.subr.bf16.mxu0 0
        %1075 = vmatpush1.bf16.msra.mxu0 0
        %1076 = vmatprep.subr.bf16.mxu0 0
        %1077 = vmatpush1.bf16.msra.mxu0 0
        %1078 = vmatprep.subr.bf16.mxu0 0
        %1079 = vmatpush1.bf16.msra.mxu0 0
        %1080 = vmatprep.subr.bf16.mxu0 0
        %1081 = vmatpush1.bf16.msra.mxu0 0
        %1082 = vmatprep.subr.bf16.mxu0 0
        %1083 = vmatpush1.bf16.msra.mxu0 0
        %1084 = vmatprep.subr.bf16.mxu0 0
        %1085 = vmatpush1.bf16.msra.mxu0 0
        %1086 = vmatprep.subr.bf16.mxu0 0
        %1087 = vmatpush1.bf16.msra.mxu0 0
        %1088 = vmatprep.subr.bf16.mxu0 0
        %1089 = vmatpush1.bf16.msra.mxu0 0
        %1090 = vmatprep.subr.bf16.mxu0 0
        %1091 = vmatpush1.bf16.msra.mxu0 0
        %1092 = vmatprep.subr.bf16.mxu0 0
        %1093 = vmatpush1.bf16.msra.mxu0 0
        %1094 = vmatprep.subr.bf16.mxu0 0
        %1095 = vmatpush1.bf16.msra.mxu0 0
        %1096 = vmatprep.mubr.bf16.mxu0 0
        %1097 = vmatmul.mubr.bf16.gmra.mrb[0].mxu0 %v1059
        %v1098 = vpop.f32.mrb[0].mxu0
        %v1099 = vadd.f32 0.0, %v1098
        %v1100 = vpop.f32.mrb[0].mxu0
        %v1101 = vpop.f32.mrb[0].mxu0
        %v1102 = vpop.f32.mrb[0].mxu0
        %1103 = vdwg.mxu0
        %v1104 = vadd.f32 %v1045, %v1099
        %v1105 = vld [vmem:[%s5] sm:$0xff]
        %1107 = vset.pattern.permute.xlu0 0
        %1108 = vperm.xlu0 %1107, %v1105
        %v1109 = vpop.permute.xlu0 %1108
        %v1111 = vadd.f32 %v1104, %v1109
        %v1112 = vmax.f32 %v1111, 0.0
        %vm1113 = vcmask 130048
        %1114 = vst.msk [vmem:[%s256] sm:$0xff] %vm1113, %v1112
        %s1115 = sand.u32 %s173, 1
        %s1116 = scalar_lea.sflag [#allocation3], %s1115
        %s1117 = sand.u32 %s173, 1
        %s1118 = smul.addr %s1117, 8
        %s1119 = scalar_lea.vmem [#allocation2], %s1118
        // Predicated region
        $region45: #{basic_block_forward.1} parent=43 // pred_check
          %p1120 = pneg %p183
        $region46: #{basic_block_forward.1} parent=43 // pred_check_branch
          %1122 = sbr.rel (%p1120) target = $region48
        $region47: #{basic_block_forward.1} parent=43 // pred_region
          %s1124 = ssub.s32 128, 128
          %1125 = vsyncadd %s1116, %s1124
          %s1126 = sadd.s32 %s25, %s24
          %s1127 = smul.addr %s1126, 128
          %s1128 = scalar_lea.hbm %s6, %s1127
          %s1130 = sshll.u32 %s1119, 4
          %s1131 = int_to_ptr.vmem [resolvable:$true] %s1130
          %1133 = dma.vmem_to_hbm [thread:$0]  %s1131, 128, %s1128, %s1116
        $region48: #{basic_block_forward.1} parent=43 // pred_fallthru
          _
      $region44: #{basic_block_forward.1} parent=5 // pred_fallthru
        _
      %p1134 = scmp.le.s32.totalorder 2, %s15
      // Predicated region
      $region49: #{basic_block_forward.1} parent=5 // pred_check
        %p1135 = pneg %p1134
      $region50: #{basic_block_forward.1} parent=5 // pred_check_branch
        %1137 = sbr.rel (%p1135) target = $region52
      $region51: #{basic_block_forward.1} parent=5 // pred_region
        %s1138 = ssub.s32 %s15, 2
        // Predicated region
        $region53: #{basic_block_forward.1} parent=51 // pred_check
          %p1139 = pneg %p189
        $region54: #{basic_block_forward.1} parent=51 // pred_check_branch
          %1141 = sbr.rel (%p1139) target = $region56
        $region55: #{basic_block_forward.1} parent=51 // pred_region
          %s1142 = sand.u32 %s174, 1
          %s1143 = scalar_lea.sflag [#allocation3], %s1142
          %s1144 = sand.u32 %s174, 1
          %s1145 = smul.addr %s1144, 8
          %s1146 = scalar_lea.vmem [#allocation2], %s1145
          %1147 = dma.done %s1143, 128
        $region56: #{basic_block_forward.1} parent=51 // pred_fallthru
          _
      $region52: #{basic_block_forward.1} parent=5 // pred_fallthru
        _
    $region6: #{basic_block_forward.1} parent=1 // loop_footer
      %s19 = sadd.s32 1, %s15
    $region7: #{basic_block_forward.1} parent=1 // loop_footer_branch
      %14 = sbr.rel target = $region3
    $region8: #{basic_block_forward.1} parent=1 // loop_exit
      _
    %1148 = vsyncpa [#allocation3], 1
    %s1149 = scalar_lea.sflag [#allocation3], 1
    %1150 = vsyncpa %s1149, 1

</llo_original>
